<compile_context>
chip_gen: v7x
topology: tpu7x:2x2x1
jax: 0.10.0
libtpu: 0.0.40
codegen_flags: <defaults>
</compile_context>

<pallas_src>
import numpy as np
import jax
import jax.numpy as jnp
from jax.experimental import pallas as pl
from jax.experimental.pallas import tpu as pltpu


# ---------------------------------------------------------------------------
# One-time parameter re-layout (torch (out, in) weights -> per-head kernel layout)
# ---------------------------------------------------------------------------
def prepare_params(params, num_heads):
    E = params["wq"].shape[0]
    Dh = E // num_heads

    def head_w(w):  # (E_out, E_in) -> W^T (E_in, E_out) -> (H, E_in, Dh)
        return jnp.asarray(w, jnp.float32).T.reshape(E, num_heads, Dh).transpose(1, 0, 2)

    def head_b(b):  # (E,) -> (H, 1, Dh)
        return jnp.asarray(b, jnp.float32).reshape(num_heads, 1, Dh)

    wqkv = jnp.stack([head_w(params["wq"]), head_w(params["wk"]), head_w(params["wv"])])  # (3,H,E,Dh)
    bqkv = jnp.stack([head_b(params["bq"]), head_b(params["bk"]), head_b(params["bv"])])  # (3,H,1,Dh)
    # out_linear: y = x @ Wo^T + bo ; rows of Wo^T are indexed by h*Dh + d -> (H, Dh, E)
    wo = jnp.asarray(params["wo"], jnp.float32).T.reshape(num_heads, Dh, E)               # (H,Dh,E)
    bo = jnp.asarray(params["bo"], jnp.float32).reshape(1, E)                             # (1,E)
    return {"wqkv": wqkv, "bqkv": bqkv, "wo": wo, "bo": bo}


# ---------------------------------------------------------------------------
# Fused MHA kernel: one batch element per grid step, all heads batched inside.
# ---------------------------------------------------------------------------
def _make_mha_kernel(num_heads, head_dim, compute_dtype, with_attn):
    approx_recip = compute_dtype != jnp.float32  # keep exact reciprocal on the f32 path

    def kernel(q_ref, k_ref, v_ref, wqkv_ref, bqkv_ref, wo_ref, bo_ref, *out_refs):
        out_ref = out_refs[0]
        attn_ref = out_refs[1] if with_attn else None

        H, Dh = num_heads, head_dim
        S = q_ref.shape[1]
        E = q_ref.shape[2]
        cdt = compute_dtype
        f32 = jnp.float32

        def proj(x_ref, idx):
            # (S, E) -> broadcast to (H, S, E), batched matmul with (H, E, Dh) weights.
            x = jnp.broadcast_to(x_ref[0].astype(cdt), (H, S, E))
            w = wqkv_ref[idx].astype(cdt)                                   # (H, E, Dh)
            y = jax.lax.dot_general(x, w, (((2,), (1,)), ((0,), (0,))),
                                    preferred_element_type=f32)             # (H, S, Dh)
            return y + bqkv_ref[idx]                                        # bias (H, 1, Dh)

        qh = proj(q_ref, 0)
        kh = proj(k_ref, 1)
        vh = proj(v_ref, 2)

        scale = 1.0 / np.sqrt(Dh)
        # scores[h, i, j] = q_h[i] . k_h[j] / sqrt(Dh)  (contract last dims, batch over H)
        scores = jax.lax.dot_general(qh.astype(cdt), kh.astype(cdt),
                                     (((2,), (2,)), ((0,), (0,))),
                                     preferred_element_type=f32) * scale    # (H, S, S)
        # TODO(synk): mask=None path only (masked_fill not implemented).
        m = jnp.max(scores, axis=-1, keepdims=True)
        e = jnp.exp(scores - m)
        denom = jnp.sum(e, axis=-1, keepdims=True)
        attn = e * pl.reciprocal(denom, approx=approx_recip)                # (H, S, S)
        # TODO(synk): attention dropout skipped (eval-mode identity).

        ctx = jax.lax.dot_general(attn.astype(cdt), vh.astype(cdt),
                                  (((2,), (1,)), ((0,), (0,))),
                                  preferred_element_type=f32)               # (H, S, Dh)

        # Output projection folded per-head, then reduced over heads:
        # out = sum_h ctx[h] @ Wo^T[h*Dh:(h+1)*Dh, :]  + bo
        per_head_out = jax.lax.dot_general(ctx.astype(cdt), wo_ref[...].astype(cdt),
                                           (((2,), (1,)), ((0,), (0,))),
                                           preferred_element_type=f32)      # (H, S, E)
        out = jnp.sum(per_head_out, axis=0) + bo_ref[...]                   # (S, E)

        out_ref[0] = out.astype(out_ref.dtype)
        if attn_ref is not None:
            attn_ref[0] = attn.astype(attn_ref.dtype)

    return kernel


# ---------------------------------------------------------------------------
# Wrapper
# ---------------------------------------------------------------------------
def multi_head_attention(q, k, v, prepared, num_heads, *,
                         compute_dtype=jnp.bfloat16, return_attn_weights=True):
    B, S, E = q.shape
    H = num_heads
    Dh = E // H
    wqkv, bqkv, wo, bo = prepared["wqkv"], prepared["bqkv"], prepared["wo"], prepared["bo"]

    kernel = _make_mha_kernel(H, Dh, compute_dtype, return_attn_weights)

    if return_attn_weights:
        out_shape = (jax.ShapeDtypeStruct((B, S, E), jnp.float32),
                     jax.ShapeDtypeStruct((B, H, S, S), jnp.float32))
        out_specs = (pl.BlockSpec((1, S, E), lambda b: (b, 0, 0)),
                     pl.BlockSpec((1, H, S, S), lambda b: (b, 0, 0, 0)))
    else:
        out_shape = jax.ShapeDtypeStruct((B, S, E), jnp.float32)
        out_specs = pl.BlockSpec((1, S, E), lambda b: (b, 0, 0))

    result = pl.pallas_call(
        kernel,
        out_shape=out_shape,
        grid=(B,),
        in_specs=[
            pl.BlockSpec((1, S, E), lambda b: (b, 0, 0)),        # q
            pl.BlockSpec((1, S, E), lambda b: (b, 0, 0)),        # k
            pl.BlockSpec((1, S, E), lambda b: (b, 0, 0)),        # v
            pl.BlockSpec((3, H, E, Dh), lambda b: (0, 0, 0, 0)),  # stacked Wq/Wk/Wv (per-head)
            pl.BlockSpec((3, H, 1, Dh), lambda b: (0, 0, 0, 0)),  # stacked bq/bk/bv
            pl.BlockSpec((H, Dh, E), lambda b: (0, 0, 0)),        # Wo (per-head)
            pl.BlockSpec((1, E), lambda b: (0, 0)),               # bo
        ],
        out_specs=out_specs,
        compiler_params=pltpu.CompilerParams(
            dimension_semantics=("parallel",),
            vmem_limit_bytes=32 * 1024 * 1024,   # sized for v7x's smaller VMEM budget
        ),
    )(q, k, v, wqkv, bqkv, wo, bo)

    return result


# ---------------------------------------------------------------------------
# Pure-JAX reference (for correctness check), f32 with HIGHEST matmul precision
# ---------------------------------------------------------------------------
def reference_mha(q, k, v, params, num_heads):
    B, S, E = q.shape
    Dh = E // num_heads
    hp = jax.lax.Precision.HIGHEST

    def lin(x, w, b):
        return jnp.einsum("bse,oe->bso", x, w, precision=hp) + b

    def split(x):
        return x.reshape(B, S, num_heads, Dh).transpose(0, 2, 1, 3)

    qh = split(lin(q, params["wq"], params["bq"]))
    kh = split(lin(k, params["wk"], params["bk"]))
    vh = split(lin(v, params["wv"], params["bv"]))
    scores = jnp.einsum("bhqd,bhkd->bhqk", qh, kh, precision=hp) / np.sqrt(Dh)
    attn = jax.nn.softmax(scores, axis=-1)
    out = jnp.einsum("bhqk,bhkd->bhqd", attn, vh, precision=hp)
    out = out.transpose(0, 2, 1, 3).reshape(B, S, E)
    out = jnp.einsum("bse,oe->bso", out, params["wo"], precision=hp) + params["bo"]
    return out, attn


if __name__ == "__main__":
    B, S, E, H = 2, 8, 32, 4

    key = jax.random.PRNGKey(0)
    keys = jax.random.split(key, 12)
    scale = 1.0 / np.sqrt(E)
    params = {
        "wq": jax.random.uniform(keys[0], (E, E), jnp.float32, -scale, scale),
        "bq": jax.random.uniform(keys[1], (E,), jnp.float32, -scale, scale),
        "wk": jax.random.uniform(keys[2], (E, E), jnp.float32, -scale, scale),
        "bk": jax.random.uniform(keys[3], (E,), jnp.float32, -scale, scale),
        "wv": jax.random.uniform(keys[4], (E, E), jnp.float32, -scale, scale),
        "bv": jax.random.uniform(keys[5], (E,), jnp.float32, -scale, scale),
        "wo": jax.random.uniform(keys[6], (E, E), jnp.float32, -scale, scale),
        "bo": jax.random.uniform(keys[7], (E,), jnp.float32, -scale, scale),
    }
    q = jax.random.normal(keys[8], (B, S, E), jnp.float32)
    k = jax.random.normal(keys[9], (B, S, E), jnp.float32)
    v = jax.random.normal(keys[10], (B, S, E), jnp.float32)

    # One-time weight re-layout (no per-call transposes).
    prepared = prepare_params(params, H)

    # Default fast path: bf16 MXU operands, f32 accumulation, attention weights returned
    # (module semantics return attn_weights).
    out_bf16, attn_bf16 = multi_head_attention(
        q, k, v, prepared, H, compute_dtype=jnp.bfloat16, return_attn_weights=True)
    out_bf16 = jax.block_until_ready(out_bf16)
    attn_bf16 = jax.block_until_ready(attn_bf16)

    # f32 path for a tighter numerical check.
    out_f32, attn_f32 = multi_head_attention(
        q, k, v, prepared, H, compute_dtype=jnp.float32, return_attn_weights=True)
    out_f32 = jax.block_until_ready(out_f32)
    attn_f32 = jax.block_until_ready(attn_f32)

    # Fast path that skips the (B, H, S, S) attention-weight HBM write entirely.
    out_fast = multi_head_attention(
        q, k, v, prepared, H, compute_dtype=jnp.bfloat16, return_attn_weights=False)
    out_fast = jax.block_until_ready(out_fast)

    ref_out, ref_attn = reference_mha(q, k, v, params, H)

    assert out_bf16.shape == (B, S, E) and attn_bf16.shape == (B, H, S, S)
    assert out_fast.shape == (B, S, E)

    # f32 kernel vs f32 reference.
    assert np.allclose(np.asarray(out_f32), np.asarray(ref_out), atol=2e-2, rtol=2e-2)
    assert np.allclose(np.asarray(attn_f32), np.asarray(ref_attn), atol=1e-2, rtol=1e-2)
    # bf16-operand kernel vs f32 reference (bf16-appropriate tolerance).
    assert np.allclose(np.asarray(out_bf16), np.asarray(ref_out), atol=7e-2, rtol=7e-2)
    assert np.allclose(np.asarray(attn_bf16), np.asarray(ref_attn), atol=3e-2, rtol=3e-2)
    # Fast path matches the full path.
    assert np.allclose(np.asarray(out_fast), np.asarray(out_bf16), atol=1e-5, rtol=1e-5)
    # Softmax sanity: rows sum to 1.
    assert np.allclose(np.asarray(attn_bf16).sum(-1), 1.0, atol=5e-3)

    print("KERNEL_OK")
</pallas_src>

<mosaic_0001>
module attributes {stable_mosaic.version = 11 : i64} {
  func.func @kernel(%arg0: i32, %arg1: memref<1x8x32xf32, #tpu.memory_space<vmem>>, %arg2: memref<1x8x32xf32, #tpu.memory_space<vmem>>, %arg3: memref<1x8x32xf32, #tpu.memory_space<vmem>>, %arg4: memref<3x4x32x8xf32, #tpu.memory_space<vmem>>, %arg5: memref<3x4x1x8xf32, #tpu.memory_space<vmem>>, %arg6: memref<4x8x32xf32, #tpu.memory_space<vmem>>, %arg7: memref<1x32xf32, #tpu.memory_space<vmem>>, %arg8: memref<1x8x32xf32, #tpu.memory_space<vmem>>, %arg9: memref<1x4x8x8xf32, #tpu.memory_space<vmem>>) attributes {dimension_semantics = [#tpu.dimension_semantics<parallel>], iteration_bounds = array<i64: 2>, scalar_prefetch = 0 : i64, scratch_operands = 0 : i64, tpu.core_type = #tpu.core_type<tc>, window_params = [{transform_indices = @transform_0, window_bounds = array<i64: 1, 8, 32>}, {transform_indices = @transform_1, window_bounds = array<i64: 1, 8, 32>}, {transform_indices = @transform_2, window_bounds = array<i64: 1, 8, 32>}, {pipeline_mode = #tpu.pipeline_mode<synchronous>, transform_indices = @transform_3, window_bounds = array<i64: 3, 4, 32, 8>}, {pipeline_mode = #tpu.pipeline_mode<synchronous>, transform_indices = @transform_4, window_bounds = array<i64: 3, 4, 1, 8>}, {pipeline_mode = #tpu.pipeline_mode<synchronous>, transform_indices = @transform_5, window_bounds = array<i64: 4, 8, 32>}, {pipeline_mode = #tpu.pipeline_mode<synchronous>, transform_indices = @transform_6, window_bounds = array<i64: 1, 32>}, {transform_indices = @transform_7, window_bounds = array<i64: 1, 8, 32>}, {transform_indices = @transform_8, window_bounds = array<i64: 1, 4, 8, 8>}]} {
    %c0 = arith.constant 0 : index
    %c0_0 = arith.constant 0 : index
    %c0_1 = arith.constant 0 : index
    %0 = vector.load %arg1[%c0, %c0_0, %c0_1] : memref<1x8x32xf32, #tpu.memory_space<vmem>>, vector<1x8x32xf32>
    %1 = vector.shape_cast %0 : vector<1x8x32xf32> to vector<8x32xf32>
    %2 = arith.truncf %1 : vector<8x32xf32> to vector<8x32xbf16>
    %3 = vector.shape_cast %2 : vector<8x32xbf16> to vector<1x8x32xbf16>
    %4 = vector.broadcast %3 : vector<1x8x32xbf16> to vector<4x8x32xbf16>
    %c0_2 = arith.constant 0 : index
    %c0_3 = arith.constant 0 : index
    %c0_4 = arith.constant 0 : index
    %c0_5 = arith.constant 0 : index
    %5 = vector.load %arg4[%c0_2, %c0_3, %c0_4, %c0_5] : memref<3x4x32x8xf32, #tpu.memory_space<vmem>>, vector<1x4x32x8xf32>
    %6 = vector.shape_cast %5 : vector<1x4x32x8xf32> to vector<4x32x8xf32>
    %7 = arith.truncf %6 : vector<4x32x8xf32> to vector<4x32x8xbf16>
    %cst = arith.constant dense<0.000000e+00> : vector<4x8x8xf32>
    %8 = tpu.matmul %4, %7, %cst {dimension_numbers = #tpu.dot_dimension_numbers<[2], [1], [1], [2], [0, 0, 0, 1, 1, 2], [0], [0]>} : vector<4x8x32xbf16>, vector<4x32x8xbf16>, vector<4x8x8xf32> -> vector<4x8x8xf32>
    %c0_6 = arith.constant 0 : index
    %c0_7 = arith.constant 0 : index
    %c0_8 = arith.constant 0 : index
    %c0_9 = arith.constant 0 : index
    %9 = vector.load %arg5[%c0_6, %c0_7, %c0_8, %c0_9] : memref<3x4x1x8xf32, #tpu.memory_space<vmem>>, vector<1x4x1x8xf32>
    %10 = vector.shape_cast %9 : vector<1x4x1x8xf32> to vector<4x1x8xf32>
    %11 = vector.broadcast %10 : vector<4x1x8xf32> to vector<4x8x8xf32>
    %12 = arith.addf %8, %11 : vector<4x8x8xf32>
    %c0_10 = arith.constant 0 : index
    %c0_11 = arith.constant 0 : index
    %c0_12 = arith.constant 0 : index
    %13 = vector.load %arg2[%c0_10, %c0_11, %c0_12] : memref<1x8x32xf32, #tpu.memory_space<vmem>>, vector<1x8x32xf32>
    %14 = vector.shape_cast %13 : vector<1x8x32xf32> to vector<8x32xf32>
    %15 = arith.truncf %14 : vector<8x32xf32> to vector<8x32xbf16>
    %16 = vector.shape_cast %15 : vector<8x32xbf16> to vector<1x8x32xbf16>
    %17 = vector.broadcast %16 : vector<1x8x32xbf16> to vector<4x8x32xbf16>
    %c1 = arith.constant 1 : index
    %c0_13 = arith.constant 0 : index
    %c0_14 = arith.constant 0 : index
    %c0_15 = arith.constant 0 : index
    %18 = vector.load %arg4[%c1, %c0_13, %c0_14, %c0_15] : memref<3x4x32x8xf32, #tpu.memory_space<vmem>>, vector<1x4x32x8xf32>
    %19 = vector.shape_cast %18 : vector<1x4x32x8xf32> to vector<4x32x8xf32>
    %20 = arith.truncf %19 : vector<4x32x8xf32> to vector<4x32x8xbf16>
    %cst_16 = arith.constant dense<0.000000e+00> : vector<4x8x8xf32>
    %21 = tpu.matmul %17, %20, %cst_16 {dimension_numbers = #tpu.dot_dimension_numbers<[2], [1], [1], [2], [0, 0, 0, 1, 1, 2], [0], [0]>} : vector<4x8x32xbf16>, vector<4x32x8xbf16>, vector<4x8x8xf32> -> vector<4x8x8xf32>
    %c1_17 = arith.constant 1 : index
    %c0_18 = arith.constant 0 : index
    %c0_19 = arith.constant 0 : index
    %c0_20 = arith.constant 0 : index
    %22 = vector.load %arg5[%c1_17, %c0_18, %c0_19, %c0_20] : memref<3x4x1x8xf32, #tpu.memory_space<vmem>>, vector<1x4x1x8xf32>
    %23 = vector.shape_cast %22 : vector<1x4x1x8xf32> to vector<4x1x8xf32>
    %24 = vector.broadcast %23 : vector<4x1x8xf32> to vector<4x8x8xf32>
    %25 = arith.addf %21, %24 : vector<4x8x8xf32>
    %c0_21 = arith.constant 0 : index
    %c0_22 = arith.constant 0 : index
    %c0_23 = arith.constant 0 : index
    %26 = vector.load %arg3[%c0_21, %c0_22, %c0_23] : memref<1x8x32xf32, #tpu.memory_space<vmem>>, vector<1x8x32xf32>
    %27 = vector.shape_cast %26 : vector<1x8x32xf32> to vector<8x32xf32>
    %28 = arith.truncf %27 : vector<8x32xf32> to vector<8x32xbf16>
    %29 = vector.shape_cast %28 : vector<8x32xbf16> to vector<1x8x32xbf16>
    %30 = vector.broadcast %29 : vector<1x8x32xbf16> to vector<4x8x32xbf16>
    %c2 = arith.constant 2 : index
    %c0_24 = arith.constant 0 : index
    %c0_25 = arith.constant 0 : index
    %c0_26 = arith.constant 0 : index
    %31 = vector.load %arg4[%c2, %c0_24, %c0_25, %c0_26] : memref<3x4x32x8xf32, #tpu.memory_space<vmem>>, vector<1x4x32x8xf32>
    %32 = vector.shape_cast %31 : vector<1x4x32x8xf32> to vector<4x32x8xf32>
    %33 = arith.truncf %32 : vector<4x32x8xf32> to vector<4x32x8xbf16>
    %cst_27 = arith.constant dense<0.000000e+00> : vector<4x8x8xf32>
    %34 = tpu.matmul %30, %33, %cst_27 {dimension_numbers = #tpu.dot_dimension_numbers<[2], [1], [1], [2], [0, 0, 0, 1, 1, 2], [0], [0]>} : vector<4x8x32xbf16>, vector<4x32x8xbf16>, vector<4x8x8xf32> -> vector<4x8x8xf32>
    %c2_28 = arith.constant 2 : index
    %c0_29 = arith.constant 0 : index
    %c0_30 = arith.constant 0 : index
    %c0_31 = arith.constant 0 : index
    %35 = vector.load %arg5[%c2_28, %c0_29, %c0_30, %c0_31] : memref<3x4x1x8xf32, #tpu.memory_space<vmem>>, vector<1x4x1x8xf32>
    %36 = vector.shape_cast %35 : vector<1x4x1x8xf32> to vector<4x1x8xf32>
    %37 = vector.broadcast %36 : vector<4x1x8xf32> to vector<4x8x8xf32>
    %38 = arith.addf %34, %37 : vector<4x8x8xf32>
    %39 = arith.truncf %12 : vector<4x8x8xf32> to vector<4x8x8xbf16>
    %40 = arith.truncf %25 : vector<4x8x8xf32> to vector<4x8x8xbf16>
    %cst_32 = arith.constant dense<0.000000e+00> : vector<4x8x8xf32>
    %41 = tpu.matmul %39, %40, %cst_32 {dimension_numbers = #tpu.dot_dimension_numbers<[2], [2], [1], [1], [0, 0, 0, 1, 1, 1], [0], [0]>} : vector<4x8x8xbf16>, vector<4x8x8xbf16>, vector<4x8x8xf32> -> vector<4x8x8xf32>
    %cst_33 = arith.constant 0.353553385 : f32
    %42 = vector.broadcast %cst_33 : f32 to vector<4x8x8xf32>
    %43 = arith.mulf %41, %42 : vector<4x8x8xf32>
    %cst_34 = arith.constant dense<0xFF800000> : vector<4x8xf32>
    %44 = vector.multi_reduction <maximumf>, %43, %cst_34 [2] : vector<4x8x8xf32> to vector<4x8xf32>
    %45 = vector.shape_cast %44 : vector<4x8xf32> to vector<4x8x1xf32>
    %46 = vector.broadcast %45 : vector<4x8x1xf32> to vector<4x8x8xf32>
    %47 = arith.subf %43, %46 : vector<4x8x8xf32>
    %48 = math.exp %47 : vector<4x8x8xf32>
    %cst_35 = arith.constant dense<0.000000e+00> : vector<4x8xf32>
    %49 = vector.multi_reduction <add>, %48, %cst_35 [2] : vector<4x8x8xf32> to vector<4x8xf32>
    %50 = vector.shape_cast %49 : vector<4x8xf32> to vector<4x8x1xf32>
    %51 = tpu.reciprocal %50 {approx = true} : vector<4x8x1xf32> -> vector<4x8x1xf32>
    %52 = vector.broadcast %51 : vector<4x8x1xf32> to vector<4x8x8xf32>
    %53 = arith.mulf %48, %52 : vector<4x8x8xf32>
    %54 = arith.truncf %53 : vector<4x8x8xf32> to vector<4x8x8xbf16>
    %55 = arith.truncf %38 : vector<4x8x8xf32> to vector<4x8x8xbf16>
    %cst_36 = arith.constant dense<0.000000e+00> : vector<4x8x8xf32>
    %56 = tpu.matmul %54, %55, %cst_36 {dimension_numbers = #tpu.dot_dimension_numbers<[2], [1], [1], [2], [0, 0, 0, 1, 1, 2], [0], [0]>} : vector<4x8x8xbf16>, vector<4x8x8xbf16>, vector<4x8x8xf32> -> vector<4x8x8xf32>
    %57 = arith.truncf %56 : vector<4x8x8xf32> to vector<4x8x8xbf16>
    %c0_37 = arith.constant 0 : index
    %c0_38 = arith.constant 0 : index
    %c0_39 = arith.constant 0 : index
    %58 = vector.load %arg6[%c0_37, %c0_38, %c0_39] : memref<4x8x32xf32, #tpu.memory_space<vmem>>, vector<4x8x32xf32>
    %59 = arith.truncf %58 : vector<4x8x32xf32> to vector<4x8x32xbf16>
    %cst_40 = arith.constant dense<0.000000e+00> : vector<4x8x32xf32>
    %60 = tpu.matmul %57, %59, %cst_40 {dimension_numbers = #tpu.dot_dimension_numbers<[2], [1], [1], [2], [0, 0, 0, 1, 1, 2], [0], [0]>} : vector<4x8x8xbf16>, vector<4x8x32xbf16>, vector<4x8x32xf32> -> vector<4x8x32xf32>
    %cst_41 = arith.constant dense<0.000000e+00> : vector<8x32xf32>
    %61 = vector.multi_reduction <add>, %60, %cst_41 [0] : vector<4x8x32xf32> to vector<8x32xf32>
    %c0_42 = arith.constant 0 : index
    %c0_43 = arith.constant 0 : index
    %62 = vector.load %arg7[%c0_42, %c0_43] : memref<1x32xf32, #tpu.memory_space<vmem>>, vector<1x32xf32>
    %63 = vector.broadcast %62 : vector<1x32xf32> to vector<8x32xf32>
    %64 = arith.addf %61, %63 : vector<8x32xf32>
    %c0_44 = arith.constant 0 : index
    %c0_45 = arith.constant 0 : index
    %c0_46 = arith.constant 0 : index
    %65 = vector.load %arg8[%c0_44, %c0_45, %c0_46] : memref<1x8x32xf32, #tpu.memory_space<vmem>>, vector<1x8x32xf32>
    %66 = vector.shape_cast %65 : vector<1x8x32xf32> to vector<8x32xf32>
    %67 = vector.shape_cast %64 : vector<8x32xf32> to vector<1x8x32xf32>
    tpu.vector_store %arg8[%c0_44, %c0_45, %c0_46], %67 {strides = array<i32>} : memref<1x8x32xf32, #tpu.memory_space<vmem>>, vector<1x8x32xf32>,
    %c0_47 = arith.constant 0 : index
    %c0_48 = arith.constant 0 : index
    %c0_49 = arith.constant 0 : index
    %c0_50 = arith.constant 0 : index
    %68 = vector.load %arg9[%c0_47, %c0_48, %c0_49, %c0_50] : memref<1x4x8x8xf32, #tpu.memory_space<vmem>>, vector<1x4x8x8xf32>
    %69 = vector.shape_cast %68 : vector<1x4x8x8xf32> to vector<4x8x8xf32>
    %70 = vector.shape_cast %53 : vector<4x8x8xf32> to vector<1x4x8x8xf32>
    tpu.vector_store %arg9[%c0_47, %c0_48, %c0_49, %c0_50], %70 {strides = array<i32>} : memref<1x4x8x8xf32, #tpu.memory_space<vmem>>, vector<1x4x8x8xf32>,
    return
  }
  func.func @transform_0(%arg0: i32) -> (i32, i32, i32) {
    %c0_i32 = arith.constant 0 : i32
    %c0_i32_0 = arith.constant 0 : i32
    %c0_i32_1 = arith.constant 0 : i32
    return %arg0, %c0_i32, %c0_i32_0 : i32, i32, i32
  }
  func.func @transform_1(%arg0: i32) -> (i32, i32, i32) {
    %c0_i32 = arith.constant 0 : i32
    %c0_i32_0 = arith.constant 0 : i32
    %c0_i32_1 = arith.constant 0 : i32
    return %arg0, %c0_i32, %c0_i32_0 : i32, i32, i32
  }
  func.func @transform_2(%arg0: i32) -> (i32, i32, i32) {
    %c0_i32 = arith.constant 0 : i32
    %c0_i32_0 = arith.constant 0 : i32
    %c0_i32_1 = arith.constant 0 : i32
    return %arg0, %c0_i32, %c0_i32_0 : i32, i32, i32
  }
  func.func @transform_3(%arg0: i32) -> (i32, i32, i32, i32) {
    %c0_i32 = arith.constant 0 : i32
    %c0_i32_0 = arith.constant 0 : i32
    %c0_i32_1 = arith.constant 0 : i32
    %c0_i32_2 = arith.constant 0 : i32
    %c0_i32_3 = arith.constant 0 : i32
    return %c0_i32, %c0_i32_0, %c0_i32_1, %c0_i32_2 : i32, i32, i32, i32
  }
  func.func @transform_4(%arg0: i32) -> (i32, i32, i32, i32) {
    %c0_i32 = arith.constant 0 : i32
    %c0_i32_0 = arith.constant 0 : i32
    %c0_i32_1 = arith.constant 0 : i32
    %c0_i32_2 = arith.constant 0 : i32
    %c0_i32_3 = arith.constant 0 : i32
    return %c0_i32, %c0_i32_0, %c0_i32_1, %c0_i32_2 : i32, i32, i32, i32
  }
  func.func @transform_5(%arg0: i32) -> (i32, i32, i32) {
    %c0_i32 = arith.constant 0 : i32
    %c0_i32_0 = arith.constant 0 : i32
    %c0_i32_1 = arith.constant 0 : i32
    %c0_i32_2 = arith.constant 0 : i32
    return %c0_i32, %c0_i32_0, %c0_i32_1 : i32, i32, i32
  }
  func.func @transform_6(%arg0: i32) -> (i32, i32) {
    %c0_i32 = arith.constant 0 : i32
    %c0_i32_0 = arith.constant 0 : i32
    %c0_i32_1 = arith.constant 0 : i32
    return %c0_i32, %c0_i32_0 : i32, i32
  }
  func.func @transform_7(%arg0: i32) -> (i32, i32, i32) {
    %c0_i32 = arith.constant 0 : i32
    %c0_i32_0 = arith.constant 0 : i32
    %c0_i32_1 = arith.constant 0 : i32
    return %arg0, %c0_i32, %c0_i32_0 : i32, i32, i32
  }
  func.func @transform_8(%arg0: i32) -> (i32, i32, i32, i32) {
    %c0_i32 = arith.constant 0 : i32
    %c0_i32_0 = arith.constant 0 : i32
    %c0_i32_1 = arith.constant 0 : i32
    %c0_i32_2 = arith.constant 0 : i32
    return %arg0, %c0_i32, %c0_i32_0, %c0_i32_1 : i32, i32, i32, i32
  }
}

</mosaic_0001>

<llo_original>
// kernel: tpu_custom_call.1
$region0: #{tpu_custom_call.1}
  #allocation0 [shape = 'u32[]', space=smem, size = 0x4, offset = 0x4, fixed_abs, tag = 'smem constant byte address 0x4 - core index']
  #allocation1 [shape = 'u32[144,128]{1,0:T(1,128)}', space=vmem, size = 0x12000, scoped, tag = 'internal scratch']
  %s0 = inlined_call_operand.vmem [shape: f32[2,8,32], index: 0, kind: input, shape index: {}]
  %s1 = inlined_call_operand.vmem [shape: f32[2,8,32], index: 1, kind: input, shape index: {}]
  %s2 = inlined_call_operand.vmem [shape: f32[2,8,32], index: 2, kind: input, shape index: {}]
  %s3 = inlined_call_operand.vmem [shape: f32[3,4,32,8], index: 3, kind: input, shape index: {}]
  %s4 = inlined_call_operand.vmem [shape: f32[3,4,1,8], index: 4, kind: input, shape index: {}]
  %s5 = inlined_call_operand.vmem [shape: f32[4,8,32], index: 5, kind: input, shape index: {}]
  %s6 = inlined_call_operand.vmem [shape: f32[1,32], index: 6, kind: input, shape index: {}]
  %s7 = inlined_call_operand.hbm [shape: f32[2,8,32], index: 7, kind: output, shape index: {0}]
  %s8 = inlined_call_operand.hbm [shape: f32[2,4,8,8], index: 8, kind: output, shape index: {1}]
  %9 = xla_tuple %s7, %s8
  %s10 = sld [smem:[#allocation0]]
  $region69: #{tpu_custom_call.1} parent=0
    _
  %s12 = ssub.s32 1, %s10
  %s13 = scalar_select 0, %s12, %s10
  $region1: #{tpu_custom_call.1} parent=0
    #allocation2 [shape = 'u8[8192]{0}', space=vmem, size = 0x2000, scoped, tag = 'output window, operand 0']
    #allocation3 [shape = 's32[2]{0}', space=sflag, size = 0x8, scoped, tag = 'scoped memory for tpu_custom_call.1']
    #allocation4 [shape = 'u8[32768]{0}', space=vmem, size = 0x8000, scoped, tag = 'output window, operand 1']
    #allocation5 [shape = 's32[2]{0}', space=sflag, size = 0x8, scoped, tag = 'scoped memory for tpu_custom_call.1']
    %14 = vsyncpa [#allocation3], 0
    %s15 = scalar_lea.sflag [#allocation3], 1
    %16 = vsyncpa %s15, 0
    %17 = vsyncpa [#allocation5], 0
    %s18 = scalar_lea.sflag [#allocation5], 1
    %19 = vsyncpa %s18, 0
    loop: start=0, step=1, limit=4
    $region2: #{tpu_custom_call.1} parent=1 // loop_pre_header
      _
    $region3: #{tpu_custom_call.1} parent=1 // loop_header
      %s21 = sphi 0, %s25
      %p22 = scmp.ge.s32.totalorder %s21, 4
      %s31 = sphi 0, %s33
      %s34 = sphi 0, %s31
      %s35 = sphi 0, %s34
      %s51 = sphi 0, %s35
      %s57 = sphi 0, %s59
      %s60 = sphi 0, %s57
      %s61 = sphi 0, %s60
      %s77 = sphi 0, %s61
      %s83 = sphi 0, %s85
      %s86 = sphi 0, %s83
      %s87 = sphi 0, %s86
      %s103 = sphi 0, %s87
      %s107 = sphi 0, %s107
      %s109 = sphi 0, %s107
      %s110 = sphi 0, %s109
      %s124 = sphi 0, %s110
      %s128 = sphi 0, %s128
      %s130 = sphi 0, %s128
      %s131 = sphi 0, %s130
      %s145 = sphi 0, %s131
      %s149 = sphi 0, %s149
      %s151 = sphi 0, %s149
      %s152 = sphi 0, %s151
      %s166 = sphi 0, %s152
      %s170 = sphi 0, %s170
      %s172 = sphi 0, %s170
      %s173 = sphi 0, %s172
      %s187 = sphi 0, %s173
      %s193 = sphi 0, %s195
      %s196 = sphi 0, %s193
      %s197 = sphi 0, %s196
      %s213 = sphi 0, %s197
      %s219 = sphi 0, %s221
      %s222 = sphi 0, %s219
      %s223 = sphi 0, %s222
      %s239 = sphi 0, %s223
    $region4: #{tpu_custom_call.1} parent=1 // loop_header_branch
      %24 = sbr.rel (%p22) target = $region8
    $region5: #{tpu_custom_call.1} parent=1 // loop_body
      %s26 = ssub.s32 %s21, 1
      %s27 = ssub.s32 %s21, 2
      %s28 = sadd.s32 %s21, 1
      %s29 = ssub.s32 %s21, %s28
      %p30 = scmp.eq.s32.totalorder %s29, 0
      %s32 = sadd.s32 %s31, 1
      %s33 = scalar_select %p30, %s31, %s32
      %p36 = pneg %p30
      %p37 = scmp.eq.s32.totalorder %s21, 1
      %p38 = por %p36, %p37
      %p39 = scmp.ne.s32.totalorder %s31, %s34
      %p40 = scmp.eq.s32.totalorder %s21, 0
      %p41 = por %p39, %p40
      %p42 = scmp.ne.s32.totalorder %s31, %s34
      %p43 = scmp.eq.s32.totalorder %s26, 1
      %p44 = por %p42, %p43
      %p45 = scmp.ne.s32.totalorder %s34, %s35
      %p46 = scmp.eq.s32.totalorder %s26, 0
      %p47 = por %p45, %p46
      %p48 = scmp.ne.s32.totalorder %s34, %s35
      %p49 = scmp.eq.s32.totalorder %s27, 1
      %p50 = por %p48, %p49
      %p52 = scmp.ne.s32.totalorder %s35, %s51
      %p53 = scmp.eq.s32.totalorder %s27, 0
      %p54 = por %p52, %p53
      %s55 = ssub.s32 %s21, %s28
      %p56 = scmp.eq.s32.totalorder %s55, 0
      %s58 = sadd.s32 %s57, 1
      %s59 = scalar_select %p56, %s57, %s58
      %p62 = pneg %p56
      %p63 = scmp.eq.s32.totalorder %s21, 1
      %p64 = por %p62, %p63
      %p65 = scmp.ne.s32.totalorder %s57, %s60
      %p66 = scmp.eq.s32.totalorder %s21, 0
      %p67 = por %p65, %p66
      %p68 = scmp.ne.s32.totalorder %s57, %s60
      %p69 = scmp.eq.s32.totalorder %s26, 1
      %p70 = por %p68, %p69
      %p71 = scmp.ne.s32.totalorder %s60, %s61
      %p72 = scmp.eq.s32.totalorder %s26, 0
      %p73 = por %p71, %p72
      %p74 = scmp.ne.s32.totalorder %s60, %s61
      %p75 = scmp.eq.s32.totalorder %s27, 1
      %p76 = por %p74, %p75
      %p78 = scmp.ne.s32.totalorder %s61, %s77
      %p79 = scmp.eq.s32.totalorder %s27, 0
      %p80 = por %p78, %p79
      %s81 = ssub.s32 %s21, %s28
      %p82 = scmp.eq.s32.totalorder %s81, 0
      %s84 = sadd.s32 %s83, 1
      %s85 = scalar_select %p82, %s83, %s84
      %p88 = pneg %p82
      %p89 = scmp.eq.s32.totalorder %s21, 1
      %p90 = por %p88, %p89
      %p91 = scmp.ne.s32.totalorder %s83, %s86
      %p92 = scmp.eq.s32.totalorder %s21, 0
      %p93 = por %p91, %p92
      %p94 = scmp.ne.s32.totalorder %s83, %s86
      %p95 = scmp.eq.s32.totalorder %s26, 1
      %p96 = por %p94, %p95
      %p97 = scmp.ne.s32.totalorder %s86, %s87
      %p98 = scmp.eq.s32.totalorder %s26, 0
      %p99 = por %p97, %p98
      %p100 = scmp.ne.s32.totalorder %s86, %s87
      %p101 = scmp.eq.s32.totalorder %s27, 1
      %p102 = por %p100, %p101
      %p104 = scmp.ne.s32.totalorder %s87, %s103
      %p105 = scmp.eq.s32.totalorder %s27, 0
      %p106 = por %p104, %p105
      %s108 = sadd.s32 %s107, 1
      %p111 = scmp.eq.s32.totalorder %s21, 1
      %p112 = scmp.ne.s32.totalorder %s107, %s109
      %p113 = scmp.eq.s32.totalorder %s21, 0
      %p114 = por %p112, %p113
      %p115 = scmp.ne.s32.totalorder %s107, %s109
      %p116 = scmp.eq.s32.totalorder %s26, 1
      %p117 = por %p115, %p116
      %p118 = scmp.ne.s32.totalorder %s109, %s110
      %p119 = scmp.eq.s32.totalorder %s26, 0
      %p120 = por %p118, %p119
      %p121 = scmp.ne.s32.totalorder %s109, %s110
      %p122 = scmp.eq.s32.totalorder %s27, 1
      %p123 = por %p121, %p122
      %p125 = scmp.ne.s32.totalorder %s110, %s124
      %p126 = scmp.eq.s32.totalorder %s27, 0
      %p127 = por %p125, %p126
      %s129 = sadd.s32 %s128, 1
      %p132 = scmp.eq.s32.totalorder %s21, 1
      %p133 = scmp.ne.s32.totalorder %s128, %s130
      %p134 = scmp.eq.s32.totalorder %s21, 0
      %p135 = por %p133, %p134
      %p136 = scmp.ne.s32.totalorder %s128, %s130
      %p137 = scmp.eq.s32.totalorder %s26, 1
      %p138 = por %p136, %p137
      %p139 = scmp.ne.s32.totalorder %s130, %s131
      %p140 = scmp.eq.s32.totalorder %s26, 0
      %p141 = por %p139, %p140
      %p142 = scmp.ne.s32.totalorder %s130, %s131
      %p143 = scmp.eq.s32.totalorder %s27, 1
      %p144 = por %p142, %p143
      %p146 = scmp.ne.s32.totalorder %s131, %s145
      %p147 = scmp.eq.s32.totalorder %s27, 0
      %p148 = por %p146, %p147
      %s150 = sadd.s32 %s149, 1
      %p153 = scmp.eq.s32.totalorder %s21, 1
      %p154 = scmp.ne.s32.totalorder %s149, %s151
      %p155 = scmp.eq.s32.totalorder %s21, 0
      %p156 = por %p154, %p155
      %p157 = scmp.ne.s32.totalorder %s149, %s151
      %p158 = scmp.eq.s32.totalorder %s26, 1
      %p159 = por %p157, %p158
      %p160 = scmp.ne.s32.totalorder %s151, %s152
      %p161 = scmp.eq.s32.totalorder %s26, 0
      %p162 = por %p160, %p161
      %p163 = scmp.ne.s32.totalorder %s151, %s152
      %p164 = scmp.eq.s32.totalorder %s27, 1
      %p165 = por %p163, %p164
      %p167 = scmp.ne.s32.totalorder %s152, %s166
      %p168 = scmp.eq.s32.totalorder %s27, 0
      %p169 = por %p167, %p168
      %s171 = sadd.s32 %s170, 1
      %p174 = scmp.eq.s32.totalorder %s21, 1
      %p175 = scmp.ne.s32.totalorder %s170, %s172
      %p176 = scmp.eq.s32.totalorder %s21, 0
      %p177 = por %p175, %p176
      %p178 = scmp.ne.s32.totalorder %s170, %s172
      %p179 = scmp.eq.s32.totalorder %s26, 1
      %p180 = por %p178, %p179
      %p181 = scmp.ne.s32.totalorder %s172, %s173
      %p182 = scmp.eq.s32.totalorder %s26, 0
      %p183 = por %p181, %p182
      %p184 = scmp.ne.s32.totalorder %s172, %s173
      %p185 = scmp.eq.s32.totalorder %s27, 1
      %p186 = por %p184, %p185
      %p188 = scmp.ne.s32.totalorder %s173, %s187
      %p189 = scmp.eq.s32.totalorder %s27, 0
      %p190 = por %p188, %p189
      %s191 = ssub.s32 %s21, %s28
      %p192 = scmp.eq.s32.totalorder %s191, 0
      %s194 = sadd.s32 %s193, 1
      %s195 = scalar_select %p192, %s193, %s194
      %p198 = pneg %p192
      %p199 = scmp.eq.s32.totalorder %s21, 1
      %p200 = por %p198, %p199
      %p201 = scmp.ne.s32.totalorder %s193, %s196
      %p202 = scmp.eq.s32.totalorder %s21, 0
      %p203 = por %p201, %p202
      %p204 = scmp.ne.s32.totalorder %s193, %s196
      %p205 = scmp.eq.s32.totalorder %s26, 1
      %p206 = por %p204, %p205
      %p207 = scmp.ne.s32.totalorder %s196, %s197
      %p208 = scmp.eq.s32.totalorder %s26, 0
      %p209 = por %p207, %p208
      %p210 = scmp.ne.s32.totalorder %s196, %s197
      %p211 = scmp.eq.s32.totalorder %s27, 1
      %p212 = por %p210, %p211
      %p214 = scmp.ne.s32.totalorder %s197, %s213
      %p215 = scmp.eq.s32.totalorder %s27, 0
      %p216 = por %p214, %p215
      %s217 = ssub.s32 %s21, %s28
      %p218 = scmp.eq.s32.totalorder %s217, 0
      %s220 = sadd.s32 %s219, 1
      %s221 = scalar_select %p218, %s219, %s220
      %p224 = pneg %p218
      %p225 = scmp.eq.s32.totalorder %s21, 1
      %p226 = por %p224, %p225
      %p227 = scmp.ne.s32.totalorder %s219, %s222
      %p228 = scmp.eq.s32.totalorder %s21, 0
      %p229 = por %p227, %p228
      %p230 = scmp.ne.s32.totalorder %s219, %s222
      %p231 = scmp.eq.s32.totalorder %s26, 1
      %p232 = por %p230, %p231
      %p233 = scmp.ne.s32.totalorder %s222, %s223
      %p234 = scmp.eq.s32.totalorder %s26, 0
      %p235 = por %p233, %p234
      %p236 = scmp.ne.s32.totalorder %s222, %s223
      %p237 = scmp.eq.s32.totalorder %s27, 1
      %p238 = por %p236, %p237
      %p240 = scmp.ne.s32.totalorder %s223, %s239
      %p241 = scmp.eq.s32.totalorder %s27, 0
      %p242 = por %p240, %p241
      %p243 = scmp.le.s32.totalorder 1, %s21
      %p244 = scmp.lt.s32.totalorder %s21, 3
      %p245 = pnand %p243, %p244
      %p246 = pneg %p245
      // Predicated region
      $region9: #{tpu_custom_call.1} parent=5 // pred_check
        _
      $region10: #{tpu_custom_call.1} parent=5 // pred_check_branch
        %248 = sbr.rel (%p245) target = $region12
      $region11: #{tpu_custom_call.1} parent=5 // pred_region
        %s249 = ssub.s32 %s21, 1
        // Predicated region
        $region13: #{tpu_custom_call.1} parent=11 // pred_check
          %p250 = pneg %p120
        $region14: #{tpu_custom_call.1} parent=11 // pred_check_branch
          %252 = sbr.rel (%p250) target = $region16
        $region15: #{tpu_custom_call.1} parent=11 // pred_region
          _
        $region16: #{tpu_custom_call.1} parent=11 // pred_fallthru
          _
        // Predicated region
        $region17: #{tpu_custom_call.1} parent=11 // pred_check
          %p253 = pneg %p141
        $region18: #{tpu_custom_call.1} parent=11 // pred_check_branch
          %255 = sbr.rel (%p253) target = $region20
        $region19: #{tpu_custom_call.1} parent=11 // pred_region
          _
        $region20: #{tpu_custom_call.1} parent=11 // pred_fallthru
          _
        // Predicated region
        $region21: #{tpu_custom_call.1} parent=11 // pred_check
          %p256 = pneg %p162
        $region22: #{tpu_custom_call.1} parent=11 // pred_check_branch
          %258 = sbr.rel (%p256) target = $region24
        $region23: #{tpu_custom_call.1} parent=11 // pred_region
          _
        $region24: #{tpu_custom_call.1} parent=11 // pred_fallthru
          _
        // Predicated region
        $region25: #{tpu_custom_call.1} parent=11 // pred_check
          %p259 = pneg %p183
        $region26: #{tpu_custom_call.1} parent=11 // pred_check_branch
          %261 = sbr.rel (%p259) target = $region28
        $region27: #{tpu_custom_call.1} parent=11 // pred_region
          _
        $region28: #{tpu_custom_call.1} parent=11 // pred_fallthru
          _
      $region12: #{tpu_custom_call.1} parent=5 // pred_fallthru
        _
      %p262 = scmp.lt.s32.totalorder %s21, 2
      // Predicated region
      $region29: #{tpu_custom_call.1} parent=5 // pred_check
        %p263 = pneg %p262
      $region30: #{tpu_custom_call.1} parent=5 // pred_check_branch
        %265 = sbr.rel (%p263) target = $region32
      $region31: #{tpu_custom_call.1} parent=5 // pred_region
        // Predicated region
        $region33: #{tpu_custom_call.1} parent=31 // pred_check
          %p266 = pneg %p41
        $region34: #{tpu_custom_call.1} parent=31 // pred_check_branch
          %268 = sbr.rel (%p266) target = $region36
        $region35: #{tpu_custom_call.1} parent=31 // pred_region
          %p269 = scmp.lt.s32.totalorder %s21, 1
          %s270 = scalar_select %p269, %s21, 1
          %s271 = smul.addr %s270, 8
          %s272 = scalar_lea.vmem %s0, %s271
        $region36: #{tpu_custom_call.1} parent=31 // pred_fallthru
          _
        // Predicated region
        $region37: #{tpu_custom_call.1} parent=31 // pred_check
          %p273 = pneg %p67
        $region38: #{tpu_custom_call.1} parent=31 // pred_check_branch
          %275 = sbr.rel (%p273) target = $region40
        $region39: #{tpu_custom_call.1} parent=31 // pred_region
          %p276 = scmp.lt.s32.totalorder %s21, 1
          %s277 = scalar_select %p276, %s21, 1
          %s278 = smul.addr %s277, 8
          %s279 = scalar_lea.vmem %s1, %s278
        $region40: #{tpu_custom_call.1} parent=31 // pred_fallthru
          _
        // Predicated region
        $region41: #{tpu_custom_call.1} parent=31 // pred_check
          %p280 = pneg %p93
        $region42: #{tpu_custom_call.1} parent=31 // pred_check_branch
          %282 = sbr.rel (%p280) target = $region44
        $region43: #{tpu_custom_call.1} parent=31 // pred_region
          %p283 = scmp.lt.s32.totalorder %s21, 1
          %s284 = scalar_select %p283, %s21, 1
          %s285 = smul.addr %s284, 8
          %s286 = scalar_lea.vmem %s2, %s285
        $region44: #{tpu_custom_call.1} parent=31 // pred_fallthru
          _
      $region32: #{tpu_custom_call.1} parent=5 // pred_fallthru
        _
      %p287 = scmp.le.s32.totalorder 1, %s21
      %p288 = scmp.lt.s32.totalorder %s21, 3
      %p289 = pnand %p287, %p288
      %p290 = pneg %p289
      // Predicated region
      $region45: #{tpu_custom_call.1} parent=5 // pred_check
        _
      $region46: #{tpu_custom_call.1} parent=5 // pred_check_branch
        %292 = sbr.rel (%p289) target = $region48
      $region47: #{tpu_custom_call.1} parent=5 // pred_region
        %s293 = ssub.s32 %s21, 1
        %p294 = scmp.lt.s32.totalorder %s26, 1
        %s295 = scalar_select %p294, %s26, 1
        %s296 = smul.addr %s295, 8
        %s297 = scalar_lea.vmem %s0, %s296
        %p298 = pneg %p47
        %p299 = pneg %p44
        %p300 = scmp.lt.s32.totalorder %s26, 1
        %s301 = scalar_select %p300, %s26, 1
        %s302 = smul.addr %s301, 8
        %s303 = scalar_lea.vmem %s1, %s302
        %p304 = pneg %p73
        %p305 = pneg %p70
        %p306 = scmp.lt.s32.totalorder %s26, 1
        %s307 = scalar_select %p306, %s26, 1
        %s308 = smul.addr %s307, 8
        %s309 = scalar_lea.vmem %s2, %s308
        %p310 = pneg %p99
        %p311 = pneg %p96
        %p312 = pneg %p120
        %p313 = pneg %p117
        %p314 = pneg %p141
        %p315 = pneg %p138
        %p316 = pneg %p162
        %p317 = pneg %p159
        %p318 = pneg %p183
        %p319 = pneg %p180
        %p320 = pneg %p209
        %p321 = pneg %p206
        %s322 = sand.u32 %s196, 1
        %s323 = scalar_lea.sflag [#allocation3], %s322
        %s324 = sand.u32 %s196, 1
        %s325 = smul.addr %s324, 8
        %s326 = scalar_lea.vmem [#allocation2], %s325
        %p327 = pneg %p235
        %p328 = pneg %p232
        %s329 = sand.u32 %s222, 1
        %s330 = scalar_lea.sflag [#allocation5], %s329
        %s331 = sand.u32 %s222, 1
        %s332 = smul.addr %s331, 32
        %s333 = scalar_lea.vmem [#allocation4], %s332
        %p334 = scmp.lt.s32.totalorder %s26, 1
        %s335 = scalar_select %p334, %s26, 1
        %s336 = smul.addr %s335, 8
        %s337 = scalar_lea.vmem %s0, %s336
        %p338 = scmp.lt.s32.totalorder %s26, 1
        %s339 = scalar_select %p338, %s26, 1
        %s340 = smul.addr %s339, 8
        %s341 = scalar_lea.vmem %s1, %s340
        %p342 = scmp.lt.s32.totalorder %s26, 1
        %s343 = scalar_select %p342, %s26, 1
        %s344 = smul.addr %s343, 8
        %s345 = scalar_lea.vmem %s2, %s344
        %v347 = vld [vmem:[%s337] sm:$0xff]
        %v348 = vpack.c.bf16 %v347, %v347
        %v349 = vld [vmem:[%s3] sm:$0xff]
        %v350 = vld [vmem:[%s3 + $0x8] sm:$0xff]
        %v351 = vld [vmem:[%s3 + $0x10] sm:$0xff]
        %v352 = vld [vmem:[%s3 + $0x18] sm:$0xff]
        %v353 = vld [vmem:[%s3 + $0x20] sm:$0xff]
        %v354 = vld [vmem:[%s3 + $0x28] sm:$0xff]
        %v355 = vld [vmem:[%s3 + $0x30] sm:$0xff]
        %v356 = vld [vmem:[%s3 + $0x38] sm:$0xff]
        %v357 = vld [vmem:[%s3 + $0x40] sm:$0xff]
        %v358 = vld [vmem:[%s3 + $0x48] sm:$0xff]
        %v359 = vld [vmem:[%s3 + $0x50] sm:$0xff]
        %v360 = vld [vmem:[%s3 + $0x58] sm:$0xff]
        %v361 = vld [vmem:[%s3 + $0x60] sm:$0xff]
        %v362 = vld [vmem:[%s3 + $0x68] sm:$0xff]
        %v363 = vld [vmem:[%s3 + $0x70] sm:$0xff]
        %v364 = vld [vmem:[%s3 + $0x78] sm:$0xff]
        %v365 = vpack.c.bf16 %v350, %v349
        %v366 = vpack.c.bf16 %v352, %v351
        %v367 = vpack.c.bf16 %v354, %v353
        %v368 = vpack.c.bf16 %v356, %v355
        %v369 = vpack.c.bf16 %v358, %v357
        %v370 = vpack.c.bf16 %v360, %v359
        %v371 = vpack.c.bf16 %v362, %v361
        %v372 = vpack.c.bf16 %v364, %v363
        %v373 = vld [vmem:[%s4] sm:$0x1]
        %v374 = vld [vmem:[%s4 + $0x1] sm:$0x1]
        %v375 = vld [vmem:[%s4 + $0x2] sm:$0x1]
        %v376 = vld [vmem:[%s4 + $0x3] sm:$0x1]
        %v381 = vlaneseq
        %v382 = vshrl.u32 %v381, 7
        %v383 = vsub.s32 0, %v382
        %v384 = vrot.slane %v373, %v383
        %v385 = vlaneseq
        %v386 = vshrl.u32 %v385, 7
        %v387 = vsub.s32 0, %v386
        %v388 = vrot.slane %v374, %v387
        %v389 = vlaneseq
        %v390 = vshrl.u32 %v389, 7
        %v391 = vsub.s32 0, %v390
        %v392 = vrot.slane %v375, %v391
        %v393 = vlaneseq
        %v394 = vshrl.u32 %v393, 7
        %v395 = vsub.s32 0, %v394
        %v396 = vrot.slane %v376, %v395
        %vm401 = vcmask 261120
        %v403 = vsel %vm401, %v348, 0
        %405 = vmatprep.subr.bf16.mxu0 0
        %406 = vmatpush1.bf16.msra.mxu0 %v365
        %407 = vmatprep.subr.bf16.mxu0 0
        %408 = vmatpush1.bf16.msra.mxu0 %v366
        %409 = vmatprep.subr.bf16.mxu0 0
        %410 = vmatpush1.bf16.msra.mxu0 0
        %411 = vmatprep.subr.bf16.mxu0 0
        %412 = vmatpush1.bf16.msra.mxu0 0
        %413 = vmatprep.subr.bf16.mxu0 0
        %414 = vmatpush1.bf16.msra.mxu0 0
        %415 = vmatprep.subr.bf16.mxu0 0
        %416 = vmatpush1.bf16.msra.mxu0 0
        %417 = vmatprep.subr.bf16.mxu0 0
        %418 = vmatpush1.bf16.msra.mxu0 0
        %419 = vmatprep.subr.bf16.mxu0 0
        %420 = vmatpush1.bf16.msra.mxu0 0
        %421 = vmatprep.subr.bf16.mxu0 0
        %422 = vmatpush1.bf16.msra.mxu0 0
        %423 = vmatprep.subr.bf16.mxu0 0
        %424 = vmatpush1.bf16.msra.mxu0 0
        %425 = vmatprep.subr.bf16.mxu0 0
        %426 = vmatpush1.bf16.msra.mxu0 0
        %427 = vmatprep.subr.bf16.mxu0 0
        %428 = vmatpush1.bf16.msra.mxu0 0
        %429 = vmatprep.subr.bf16.mxu0 0
        %430 = vmatpush1.bf16.msra.mxu0 0
        %431 = vmatprep.subr.bf16.mxu0 0
        %432 = vmatpush1.bf16.msra.mxu0 0
        %433 = vmatprep.subr.bf16.mxu0 0
        %434 = vmatpush1.bf16.msra.mxu0 0
        %435 = vmatprep.subr.bf16.mxu0 0
        %436 = vmatpush1.bf16.msra.mxu0 0
        %437 = vmatprep.mubr.bf16.mxu0 0
        %438 = vmatmul.mubr.bf16.gmra.mrb[0].mxu0 %v403
        %v439 = vpop.f32.mrb[0].mxu0
        %v440 = vadd.f32 %v384, %v439
        %v441 = vpop.f32.mrb[0].mxu0
        %v442 = vpop.f32.mrb[0].mxu0
        %v443 = vpop.f32.mrb[0].mxu0
        %444 = vdwg.mxu0
        %445 = vmatprep.subr.bf16.mxu0 0
        %446 = vmatpush1.bf16.msra.mxu0 %v367
        %447 = vmatprep.subr.bf16.mxu0 0
        %448 = vmatpush1.bf16.msra.mxu0 %v368
        %449 = vmatprep.subr.bf16.mxu0 0
        %450 = vmatpush1.bf16.msra.mxu0 0
        %451 = vmatprep.subr.bf16.mxu0 0
        %452 = vmatpush1.bf16.msra.mxu0 0
        %453 = vmatprep.subr.bf16.mxu0 0
        %454 = vmatpush1.bf16.msra.mxu0 0
        %455 = vmatprep.subr.bf16.mxu0 0
        %456 = vmatpush1.bf16.msra.mxu0 0
        %457 = vmatprep.subr.bf16.mxu0 0
        %458 = vmatpush1.bf16.msra.mxu0 0
        %459 = vmatprep.subr.bf16.mxu0 0
        %460 = vmatpush1.bf16.msra.mxu0 0
        %461 = vmatprep.subr.bf16.mxu0 0
        %462 = vmatpush1.bf16.msra.mxu0 0
        %463 = vmatprep.subr.bf16.mxu0 0
        %464 = vmatpush1.bf16.msra.mxu0 0
        %465 = vmatprep.subr.bf16.mxu0 0
        %466 = vmatpush1.bf16.msra.mxu0 0
        %467 = vmatprep.subr.bf16.mxu0 0
        %468 = vmatpush1.bf16.msra.mxu0 0
        %469 = vmatprep.subr.bf16.mxu0 0
        %470 = vmatpush1.bf16.msra.mxu0 0
        %471 = vmatprep.subr.bf16.mxu0 0
        %472 = vmatpush1.bf16.msra.mxu0 0
        %473 = vmatprep.subr.bf16.mxu0 0
        %474 = vmatpush1.bf16.msra.mxu0 0
        %475 = vmatprep.subr.bf16.mxu0 0
        %476 = vmatpush1.bf16.msra.mxu0 0
        %477 = vmatprep.mubr.bf16.mxu0 0
        %478 = vmatmul.mubr.bf16.gmra.mrb[0].mxu0 %v403
        %v479 = vpop.f32.mrb[0].mxu0
        %v480 = vadd.f32 %v388, %v479
        %v481 = vpop.f32.mrb[0].mxu0
        %v482 = vpop.f32.mrb[0].mxu0
        %v483 = vpop.f32.mrb[0].mxu0
        %484 = vdwg.mxu0
        %485 = vmatprep.subr.bf16.mxu0 0
        %486 = vmatpush1.bf16.msra.mxu0 %v369
        %487 = vmatprep.subr.bf16.mxu0 0
        %488 = vmatpush1.bf16.msra.mxu0 %v370
        %489 = vmatprep.subr.bf16.mxu0 0
        %490 = vmatpush1.bf16.msra.mxu0 0
        %491 = vmatprep.subr.bf16.mxu0 0
        %492 = vmatpush1.bf16.msra.mxu0 0
        %493 = vmatprep.subr.bf16.mxu0 0
        %494 = vmatpush1.bf16.msra.mxu0 0
        %495 = vmatprep.subr.bf16.mxu0 0
        %496 = vmatpush1.bf16.msra.mxu0 0
        %497 = vmatprep.subr.bf16.mxu0 0
        %498 = vmatpush1.bf16.msra.mxu0 0
        %499 = vmatprep.subr.bf16.mxu0 0
        %500 = vmatpush1.bf16.msra.mxu0 0
        %501 = vmatprep.subr.bf16.mxu0 0
        %502 = vmatpush1.bf16.msra.mxu0 0
        %503 = vmatprep.subr.bf16.mxu0 0
        %504 = vmatpush1.bf16.msra.mxu0 0
        %505 = vmatprep.subr.bf16.mxu0 0
        %506 = vmatpush1.bf16.msra.mxu0 0
        %507 = vmatprep.subr.bf16.mxu0 0
        %508 = vmatpush1.bf16.msra.mxu0 0
        %509 = vmatprep.subr.bf16.mxu0 0
        %510 = vmatpush1.bf16.msra.mxu0 0
        %511 = vmatprep.subr.bf16.mxu0 0
        %512 = vmatpush1.bf16.msra.mxu0 0
        %513 = vmatprep.subr.bf16.mxu0 0
        %514 = vmatpush1.bf16.msra.mxu0 0
        %515 = vmatprep.subr.bf16.mxu0 0
        %516 = vmatpush1.bf16.msra.mxu0 0
        %517 = vmatprep.mubr.bf16.mxu0 0
        %518 = vmatmul.mubr.bf16.gmra.mrb[0].mxu0 %v403
        %v519 = vpop.f32.mrb[0].mxu0
        %v520 = vadd.f32 %v392, %v519
        %v521 = vpop.f32.mrb[0].mxu0
        %v522 = vpop.f32.mrb[0].mxu0
        %v523 = vpop.f32.mrb[0].mxu0
        %524 = vdwg.mxu0
        %525 = vmatprep.subr.bf16.mxu0 0
        %526 = vmatpush1.bf16.msra.mxu0 %v371
        %527 = vmatprep.subr.bf16.mxu0 0
        %528 = vmatpush1.bf16.msra.mxu0 %v372
        %529 = vmatprep.subr.bf16.mxu0 0
        %530 = vmatpush1.bf16.msra.mxu0 0
        %531 = vmatprep.subr.bf16.mxu0 0
        %532 = vmatpush1.bf16.msra.mxu0 0
        %533 = vmatprep.subr.bf16.mxu0 0
        %534 = vmatpush1.bf16.msra.mxu0 0
        %535 = vmatprep.subr.bf16.mxu0 0
        %536 = vmatpush1.bf16.msra.mxu0 0
        %537 = vmatprep.subr.bf16.mxu0 0
        %538 = vmatpush1.bf16.msra.mxu0 0
        %539 = vmatprep.subr.bf16.mxu0 0
        %540 = vmatpush1.bf16.msra.mxu0 0
        %541 = vmatprep.subr.bf16.mxu0 0
        %542 = vmatpush1.bf16.msra.mxu0 0
        %543 = vmatprep.subr.bf16.mxu0 0
        %544 = vmatpush1.bf16.msra.mxu0 0
        %545 = vmatprep.subr.bf16.mxu0 0
        %546 = vmatpush1.bf16.msra.mxu0 0
        %547 = vmatprep.subr.bf16.mxu0 0
        %548 = vmatpush1.bf16.msra.mxu0 0
        %549 = vmatprep.subr.bf16.mxu0 0
        %550 = vmatpush1.bf16.msra.mxu0 0
        %551 = vmatprep.subr.bf16.mxu0 0
        %552 = vmatpush1.bf16.msra.mxu0 0
        %553 = vmatprep.subr.bf16.mxu0 0
        %554 = vmatpush1.bf16.msra.mxu0 0
        %555 = vmatprep.subr.bf16.mxu0 0
        %556 = vmatpush1.bf16.msra.mxu0 0
        %557 = vmatprep.mubr.bf16.mxu0 0
        %558 = vmatmul.mubr.bf16.gmra.mrb[0].mxu0 %v403
        %v559 = vpop.f32.mrb[0].mxu0
        %v560 = vadd.f32 %v396, %v559
        %v561 = vpop.f32.mrb[0].mxu0
        %v562 = vpop.f32.mrb[0].mxu0
        %v563 = vpop.f32.mrb[0].mxu0
        %564 = vdwg.mxu0
        %v565 = vld [vmem:[%s341] sm:$0xff]
        %v566 = vpack.c.bf16 %v565, %v565
        %s567 = scalar_lea.vmem %s3, 128
        %v568 = vld [vmem:[%s567] sm:$0xff]
        %v569 = vld [vmem:[%s567 + $0x8] sm:$0xff]
        %v570 = vld [vmem:[%s567 + $0x10] sm:$0xff]
        %v571 = vld [vmem:[%s567 + $0x18] sm:$0xff]
        %v572 = vld [vmem:[%s567 + $0x20] sm:$0xff]
        %v573 = vld [vmem:[%s567 + $0x28] sm:$0xff]
        %v574 = vld [vmem:[%s567 + $0x30] sm:$0xff]
        %v575 = vld [vmem:[%s567 + $0x38] sm:$0xff]
        %v576 = vld [vmem:[%s567 + $0x40] sm:$0xff]
        %v577 = vld [vmem:[%s567 + $0x48] sm:$0xff]
        %v578 = vld [vmem:[%s567 + $0x50] sm:$0xff]
        %v579 = vld [vmem:[%s567 + $0x58] sm:$0xff]
        %v580 = vld [vmem:[%s567 + $0x60] sm:$0xff]
        %v581 = vld [vmem:[%s567 + $0x68] sm:$0xff]
        %v582 = vld [vmem:[%s567 + $0x70] sm:$0xff]
        %v583 = vld [vmem:[%s567 + $0x78] sm:$0xff]
        %v584 = vpack.c.bf16 %v569, %v568
        %v585 = vpack.c.bf16 %v571, %v570
        %v586 = vpack.c.bf16 %v573, %v572
        %v587 = vpack.c.bf16 %v575, %v574
        %v588 = vpack.c.bf16 %v577, %v576
        %v589 = vpack.c.bf16 %v579, %v578
        %v590 = vpack.c.bf16 %v581, %v580
        %v591 = vpack.c.bf16 %v583, %v582
        %s592 = scalar_lea.vmem %s4, 4
        %v593 = vld [vmem:[%s592] sm:$0x1]
        %v594 = vld [vmem:[%s592 + $0x1] sm:$0x1]
        %v595 = vld [vmem:[%s592 + $0x2] sm:$0x1]
        %v596 = vld [vmem:[%s592 + $0x3] sm:$0x1]
        %v601 = vlaneseq
        %v602 = vshrl.u32 %v601, 7
        %v603 = vsub.s32 0, %v602
        %v604 = vrot.slane %v593, %v603
        %v605 = vlaneseq
        %v606 = vshrl.u32 %v605, 7
        %v607 = vsub.s32 0, %v606
        %v608 = vrot.slane %v594, %v607
        %v609 = vlaneseq
        %v610 = vshrl.u32 %v609, 7
        %v611 = vsub.s32 0, %v610
        %v612 = vrot.slane %v595, %v611
        %v613 = vlaneseq
        %v614 = vshrl.u32 %v613, 7
        %v615 = vsub.s32 0, %v614
        %v616 = vrot.slane %v596, %v615
        %v622 = vsel %vm401, %v566, 0
        %624 = vmatprep.subr.bf16.mxu0 0
        %625 = vmatpush1.bf16.msra.mxu0 %v584
        %626 = vmatprep.subr.bf16.mxu0 0
        %627 = vmatpush1.bf16.msra.mxu0 %v585
        %628 = vmatprep.subr.bf16.mxu0 0
        %629 = vmatpush1.bf16.msra.mxu0 0
        %630 = vmatprep.subr.bf16.mxu0 0
        %631 = vmatpush1.bf16.msra.mxu0 0
        %632 = vmatprep.subr.bf16.mxu0 0
        %633 = vmatpush1.bf16.msra.mxu0 0
        %634 = vmatprep.subr.bf16.mxu0 0
        %635 = vmatpush1.bf16.msra.mxu0 0
        %636 = vmatprep.subr.bf16.mxu0 0
        %637 = vmatpush1.bf16.msra.mxu0 0
        %638 = vmatprep.subr.bf16.mxu0 0
        %639 = vmatpush1.bf16.msra.mxu0 0
        %640 = vmatprep.subr.bf16.mxu0 0
        %641 = vmatpush1.bf16.msra.mxu0 0
        %642 = vmatprep.subr.bf16.mxu0 0
        %643 = vmatpush1.bf16.msra.mxu0 0
        %644 = vmatprep.subr.bf16.mxu0 0
        %645 = vmatpush1.bf16.msra.mxu0 0
        %646 = vmatprep.subr.bf16.mxu0 0
        %647 = vmatpush1.bf16.msra.mxu0 0
        %648 = vmatprep.subr.bf16.mxu0 0
        %649 = vmatpush1.bf16.msra.mxu0 0
        %650 = vmatprep.subr.bf16.mxu0 0
        %651 = vmatpush1.bf16.msra.mxu0 0
        %652 = vmatprep.subr.bf16.mxu0 0
        %653 = vmatpush1.bf16.msra.mxu0 0
        %654 = vmatprep.subr.bf16.mxu0 0
        %655 = vmatpush1.bf16.msra.mxu0 0
        %656 = vmatprep.mubr.bf16.mxu0 0
        %657 = vmatmul.mubr.bf16.gmra.mrb[0].mxu0 %v622
        %v658 = vpop.f32.mrb[0].mxu0
        %v659 = vadd.f32 %v604, %v658
        %v660 = vpop.f32.mrb[0].mxu0
        %v661 = vpop.f32.mrb[0].mxu0
        %v662 = vpop.f32.mrb[0].mxu0
        %663 = vdwg.mxu0
        %664 = vmatprep.subr.bf16.mxu0 0
        %665 = vmatpush1.bf16.msra.mxu0 %v586
        %666 = vmatprep.subr.bf16.mxu0 0
        %667 = vmatpush1.bf16.msra.mxu0 %v587
        %668 = vmatprep.subr.bf16.mxu0 0
        %669 = vmatpush1.bf16.msra.mxu0 0
        %670 = vmatprep.subr.bf16.mxu0 0
        %671 = vmatpush1.bf16.msra.mxu0 0
        %672 = vmatprep.subr.bf16.mxu0 0
        %673 = vmatpush1.bf16.msra.mxu0 0
        %674 = vmatprep.subr.bf16.mxu0 0
        %675 = vmatpush1.bf16.msra.mxu0 0
        %676 = vmatprep.subr.bf16.mxu0 0
        %677 = vmatpush1.bf16.msra.mxu0 0
        %678 = vmatprep.subr.bf16.mxu0 0
        %679 = vmatpush1.bf16.msra.mxu0 0
        %680 = vmatprep.subr.bf16.mxu0 0
        %681 = vmatpush1.bf16.msra.mxu0 0
        %682 = vmatprep.subr.bf16.mxu0 0
        %683 = vmatpush1.bf16.msra.mxu0 0
        %684 = vmatprep.subr.bf16.mxu0 0
        %685 = vmatpush1.bf16.msra.mxu0 0
        %686 = vmatprep.subr.bf16.mxu0 0
        %687 = vmatpush1.bf16.msra.mxu0 0
        %688 = vmatprep.subr.bf16.mxu0 0
        %689 = vmatpush1.bf16.msra.mxu0 0
        %690 = vmatprep.subr.bf16.mxu0 0
        %691 = vmatpush1.bf16.msra.mxu0 0
        %692 = vmatprep.subr.bf16.mxu0 0
        %693 = vmatpush1.bf16.msra.mxu0 0
        %694 = vmatprep.subr.bf16.mxu0 0
        %695 = vmatpush1.bf16.msra.mxu0 0
        %696 = vmatprep.mubr.bf16.mxu0 0
        %697 = vmatmul.mubr.bf16.gmra.mrb[0].mxu0 %v622
        %v698 = vpop.f32.mrb[0].mxu0
        %v699 = vadd.f32 %v608, %v698
        %v700 = vpop.f32.mrb[0].mxu0
        %v701 = vpop.f32.mrb[0].mxu0
        %v702 = vpop.f32.mrb[0].mxu0
        %703 = vdwg.mxu0
        %704 = vmatprep.subr.bf16.mxu0 0
        %705 = vmatpush1.bf16.msra.mxu0 %v588
        %706 = vmatprep.subr.bf16.mxu0 0
        %707 = vmatpush1.bf16.msra.mxu0 %v589
        %708 = vmatprep.subr.bf16.mxu0 0
        %709 = vmatpush1.bf16.msra.mxu0 0
        %710 = vmatprep.subr.bf16.mxu0 0
        %711 = vmatpush1.bf16.msra.mxu0 0
        %712 = vmatprep.subr.bf16.mxu0 0
        %713 = vmatpush1.bf16.msra.mxu0 0
        %714 = vmatprep.subr.bf16.mxu0 0
        %715 = vmatpush1.bf16.msra.mxu0 0
        %716 = vmatprep.subr.bf16.mxu0 0
        %717 = vmatpush1.bf16.msra.mxu0 0
        %718 = vmatprep.subr.bf16.mxu0 0
        %719 = vmatpush1.bf16.msra.mxu0 0
        %720 = vmatprep.subr.bf16.mxu0 0
        %721 = vmatpush1.bf16.msra.mxu0 0
        %722 = vmatprep.subr.bf16.mxu0 0
        %723 = vmatpush1.bf16.msra.mxu0 0
        %724 = vmatprep.subr.bf16.mxu0 0
        %725 = vmatpush1.bf16.msra.mxu0 0
        %726 = vmatprep.subr.bf16.mxu0 0
        %727 = vmatpush1.bf16.msra.mxu0 0
        %728 = vmatprep.subr.bf16.mxu0 0
        %729 = vmatpush1.bf16.msra.mxu0 0
        %730 = vmatprep.subr.bf16.mxu0 0
        %731 = vmatpush1.bf16.msra.mxu0 0
        %732 = vmatprep.subr.bf16.mxu0 0
        %733 = vmatpush1.bf16.msra.mxu0 0
        %734 = vmatprep.subr.bf16.mxu0 0
        %735 = vmatpush1.bf16.msra.mxu0 0
        %736 = vmatprep.mubr.bf16.mxu0 0
        %737 = vmatmul.mubr.bf16.gmra.mrb[0].mxu0 %v622
        %v738 = vpop.f32.mrb[0].mxu0
        %v739 = vadd.f32 %v612, %v738
        %v740 = vpop.f32.mrb[0].mxu0
        %v741 = vpop.f32.mrb[0].mxu0
        %v742 = vpop.f32.mrb[0].mxu0
        %743 = vdwg.mxu0
        %744 = vmatprep.subr.bf16.mxu0 0
        %745 = vmatpush1.bf16.msra.mxu0 %v590
        %746 = vmatprep.subr.bf16.mxu0 0
        %747 = vmatpush1.bf16.msra.mxu0 %v591
        %748 = vmatprep.subr.bf16.mxu0 0
        %749 = vmatpush1.bf16.msra.mxu0 0
        %750 = vmatprep.subr.bf16.mxu0 0
        %751 = vmatpush1.bf16.msra.mxu0 0
        %752 = vmatprep.subr.bf16.mxu0 0
        %753 = vmatpush1.bf16.msra.mxu0 0
        %754 = vmatprep.subr.bf16.mxu0 0
        %755 = vmatpush1.bf16.msra.mxu0 0
        %756 = vmatprep.subr.bf16.mxu0 0
        %757 = vmatpush1.bf16.msra.mxu0 0
        %758 = vmatprep.subr.bf16.mxu0 0
        %759 = vmatpush1.bf16.msra.mxu0 0
        %760 = vmatprep.subr.bf16.mxu0 0
        %761 = vmatpush1.bf16.msra.mxu0 0
        %762 = vmatprep.subr.bf16.mxu0 0
        %763 = vmatpush1.bf16.msra.mxu0 0
        %764 = vmatprep.subr.bf16.mxu0 0
        %765 = vmatpush1.bf16.msra.mxu0 0
        %766 = vmatprep.subr.bf16.mxu0 0
        %767 = vmatpush1.bf16.msra.mxu0 0
        %768 = vmatprep.subr.bf16.mxu0 0
        %769 = vmatpush1.bf16.msra.mxu0 0
        %770 = vmatprep.subr.bf16.mxu0 0
        %771 = vmatpush1.bf16.msra.mxu0 0
        %772 = vmatprep.subr.bf16.mxu0 0
        %773 = vmatpush1.bf16.msra.mxu0 0
        %774 = vmatprep.subr.bf16.mxu0 0
        %775 = vmatpush1.bf16.msra.mxu0 0
        %776 = vmatprep.mubr.bf16.mxu0 0
        %777 = vmatmul.mubr.bf16.gmra.mrb[0].mxu0 %v622
        %v778 = vpop.f32.mrb[0].mxu0
        %v779 = vadd.f32 %v616, %v778
        %v780 = vpop.f32.mrb[0].mxu0
        %v781 = vpop.f32.mrb[0].mxu0
        %v782 = vpop.f32.mrb[0].mxu0
        %783 = vdwg.mxu0
        %v784 = vld [vmem:[%s345] sm:$0xff]
        %v785 = vpack.c.bf16 %v784, %v784
        %s786 = scalar_lea.vmem %s3, 256
        %v787 = vld [vmem:[%s786] sm:$0xff]
        %v788 = vld [vmem:[%s786 + $0x8] sm:$0xff]
        %v789 = vld [vmem:[%s786 + $0x10] sm:$0xff]
        %v790 = vld [vmem:[%s786 + $0x18] sm:$0xff]
        %v791 = vld [vmem:[%s786 + $0x20] sm:$0xff]
        %v792 = vld [vmem:[%s786 + $0x28] sm:$0xff]
        %v793 = vld [vmem:[%s786 + $0x30] sm:$0xff]
        %v794 = vld [vmem:[%s786 + $0x38] sm:$0xff]
        %v795 = vld [vmem:[%s786 + $0x40] sm:$0xff]
        %v796 = vld [vmem:[%s786 + $0x48] sm:$0xff]
        %v797 = vld [vmem:[%s786 + $0x50] sm:$0xff]
        %v798 = vld [vmem:[%s786 + $0x58] sm:$0xff]
        %v799 = vld [vmem:[%s786 + $0x60] sm:$0xff]
        %v800 = vld [vmem:[%s786 + $0x68] sm:$0xff]
        %v801 = vld [vmem:[%s786 + $0x70] sm:$0xff]
        %v802 = vld [vmem:[%s786 + $0x78] sm:$0xff]
        %v803 = vpack.c.bf16 %v788, %v787
        %v804 = vpack.c.bf16 %v790, %v789
        %v805 = vpack.c.bf16 %v792, %v791
        %v806 = vpack.c.bf16 %v794, %v793
        %v807 = vpack.c.bf16 %v796, %v795
        %v808 = vpack.c.bf16 %v798, %v797
        %v809 = vpack.c.bf16 %v800, %v799
        %v810 = vpack.c.bf16 %v802, %v801
        %s811 = scalar_lea.vmem %s4, 8
        %v812 = vld [vmem:[%s811] sm:$0x1]
        %v813 = vld [vmem:[%s811 + $0x1] sm:$0x1]
        %v814 = vld [vmem:[%s811 + $0x2] sm:$0x1]
        %v815 = vld [vmem:[%s811 + $0x3] sm:$0x1]
        %v820 = vlaneseq
        %v821 = vshrl.u32 %v820, 7
        %v822 = vsub.s32 0, %v821
        %v823 = vrot.slane %v812, %v822
        %v824 = vlaneseq
        %v825 = vshrl.u32 %v824, 7
        %v826 = vsub.s32 0, %v825
        %v827 = vrot.slane %v813, %v826
        %v828 = vlaneseq
        %v829 = vshrl.u32 %v828, 7
        %v830 = vsub.s32 0, %v829
        %v831 = vrot.slane %v814, %v830
        %v832 = vlaneseq
        %v833 = vshrl.u32 %v832, 7
        %v834 = vsub.s32 0, %v833
        %v835 = vrot.slane %v815, %v834
        %v841 = vsel %vm401, %v785, 0
        %843 = vmatprep.subr.bf16.mxu0 0
        %844 = vmatpush1.bf16.msra.mxu0 %v803
        %845 = vmatprep.subr.bf16.mxu0 0
        %846 = vmatpush1.bf16.msra.mxu0 %v804
        %847 = vmatprep.subr.bf16.mxu0 0
        %848 = vmatpush1.bf16.msra.mxu0 0
        %849 = vmatprep.subr.bf16.mxu0 0
        %850 = vmatpush1.bf16.msra.mxu0 0
        %851 = vmatprep.subr.bf16.mxu0 0
        %852 = vmatpush1.bf16.msra.mxu0 0
        %853 = vmatprep.subr.bf16.mxu0 0
        %854 = vmatpush1.bf16.msra.mxu0 0
        %855 = vmatprep.subr.bf16.mxu0 0
        %856 = vmatpush1.bf16.msra.mxu0 0
        %857 = vmatprep.subr.bf16.mxu0 0
        %858 = vmatpush1.bf16.msra.mxu0 0
        %859 = vmatprep.subr.bf16.mxu0 0
        %860 = vmatpush1.bf16.msra.mxu0 0
        %861 = vmatprep.subr.bf16.mxu0 0
        %862 = vmatpush1.bf16.msra.mxu0 0
        %863 = vmatprep.subr.bf16.mxu0 0
        %864 = vmatpush1.bf16.msra.mxu0 0
        %865 = vmatprep.subr.bf16.mxu0 0
        %866 = vmatpush1.bf16.msra.mxu0 0
        %867 = vmatprep.subr.bf16.mxu0 0
        %868 = vmatpush1.bf16.msra.mxu0 0
        %869 = vmatprep.subr.bf16.mxu0 0
        %870 = vmatpush1.bf16.msra.mxu0 0
        %871 = vmatprep.subr.bf16.mxu0 0
        %872 = vmatpush1.bf16.msra.mxu0 0
        %873 = vmatprep.subr.bf16.mxu0 0
        %874 = vmatpush1.bf16.msra.mxu0 0
        %875 = vmatprep.mubr.bf16.mxu0 0
        %876 = vmatmul.mubr.bf16.gmra.mrb[0].mxu0 %v841
        %v877 = vpop.f32.mrb[0].mxu0
        %v878 = vadd.f32 %v823, %v877
        %v879 = vpop.f32.mrb[0].mxu0
        %v880 = vpop.f32.mrb[0].mxu0
        %v881 = vpop.f32.mrb[0].mxu0
        %882 = vdwg.mxu0
        %883 = vmatprep.subr.bf16.mxu0 0
        %884 = vmatpush1.bf16.msra.mxu0 %v805
        %885 = vmatprep.subr.bf16.mxu0 0
        %886 = vmatpush1.bf16.msra.mxu0 %v806
        %887 = vmatprep.subr.bf16.mxu0 0
        %888 = vmatpush1.bf16.msra.mxu0 0
        %889 = vmatprep.subr.bf16.mxu0 0
        %890 = vmatpush1.bf16.msra.mxu0 0
        %891 = vmatprep.subr.bf16.mxu0 0
        %892 = vmatpush1.bf16.msra.mxu0 0
        %893 = vmatprep.subr.bf16.mxu0 0
        %894 = vmatpush1.bf16.msra.mxu0 0
        %895 = vmatprep.subr.bf16.mxu0 0
        %896 = vmatpush1.bf16.msra.mxu0 0
        %897 = vmatprep.subr.bf16.mxu0 0
        %898 = vmatpush1.bf16.msra.mxu0 0
        %899 = vmatprep.subr.bf16.mxu0 0
        %900 = vmatpush1.bf16.msra.mxu0 0
        %901 = vmatprep.subr.bf16.mxu0 0
        %902 = vmatpush1.bf16.msra.mxu0 0
        %903 = vmatprep.subr.bf16.mxu0 0
        %904 = vmatpush1.bf16.msra.mxu0 0
        %905 = vmatprep.subr.bf16.mxu0 0
        %906 = vmatpush1.bf16.msra.mxu0 0
        %907 = vmatprep.subr.bf16.mxu0 0
        %908 = vmatpush1.bf16.msra.mxu0 0
        %909 = vmatprep.subr.bf16.mxu0 0
        %910 = vmatpush1.bf16.msra.mxu0 0
        %911 = vmatprep.subr.bf16.mxu0 0
        %912 = vmatpush1.bf16.msra.mxu0 0
        %913 = vmatprep.subr.bf16.mxu0 0
        %914 = vmatpush1.bf16.msra.mxu0 0
        %915 = vmatprep.mubr.bf16.mxu0 0
        %916 = vmatmul.mubr.bf16.gmra.mrb[0].mxu0 %v841
        %v917 = vpop.f32.mrb[0].mxu0
        %v918 = vadd.f32 %v827, %v917
        %v919 = vpop.f32.mrb[0].mxu0
        %v920 = vpop.f32.mrb[0].mxu0
        %v921 = vpop.f32.mrb[0].mxu0
        %922 = vdwg.mxu0
        %923 = vmatprep.subr.bf16.mxu0 0
        %924 = vmatpush1.bf16.msra.mxu0 %v807
        %925 = vmatprep.subr.bf16.mxu0 0
        %926 = vmatpush1.bf16.msra.mxu0 %v808
        %927 = vmatprep.subr.bf16.mxu0 0
        %928 = vmatpush1.bf16.msra.mxu0 0
        %929 = vmatprep.subr.bf16.mxu0 0
        %930 = vmatpush1.bf16.msra.mxu0 0
        %931 = vmatprep.subr.bf16.mxu0 0
        %932 = vmatpush1.bf16.msra.mxu0 0
        %933 = vmatprep.subr.bf16.mxu0 0
        %934 = vmatpush1.bf16.msra.mxu0 0
        %935 = vmatprep.subr.bf16.mxu0 0
        %936 = vmatpush1.bf16.msra.mxu0 0
        %937 = vmatprep.subr.bf16.mxu0 0
        %938 = vmatpush1.bf16.msra.mxu0 0
        %939 = vmatprep.subr.bf16.mxu0 0
        %940 = vmatpush1.bf16.msra.mxu0 0
        %941 = vmatprep.subr.bf16.mxu0 0
        %942 = vmatpush1.bf16.msra.mxu0 0
        %943 = vmatprep.subr.bf16.mxu0 0
        %944 = vmatpush1.bf16.msra.mxu0 0
        %945 = vmatprep.subr.bf16.mxu0 0
        %946 = vmatpush1.bf16.msra.mxu0 0
        %947 = vmatprep.subr.bf16.mxu0 0
        %948 = vmatpush1.bf16.msra.mxu0 0
        %949 = vmatprep.subr.bf16.mxu0 0
        %950 = vmatpush1.bf16.msra.mxu0 0
        %951 = vmatprep.subr.bf16.mxu0 0
        %952 = vmatpush1.bf16.msra.mxu0 0
        %953 = vmatprep.subr.bf16.mxu0 0
        %954 = vmatpush1.bf16.msra.mxu0 0
        %955 = vmatprep.mubr.bf16.mxu0 0
        %956 = vmatmul.mubr.bf16.gmra.mrb[0].mxu0 %v841
        %v957 = vpop.f32.mrb[0].mxu0
        %v958 = vadd.f32 %v831, %v957
        %v959 = vpop.f32.mrb[0].mxu0
        %v960 = vpop.f32.mrb[0].mxu0
        %v961 = vpop.f32.mrb[0].mxu0
        %962 = vdwg.mxu0
        %963 = vmatprep.subr.bf16.mxu0 0
        %964 = vmatpush1.bf16.msra.mxu0 %v809
        %965 = vmatprep.subr.bf16.mxu0 0
        %966 = vmatpush1.bf16.msra.mxu0 %v810
        %967 = vmatprep.subr.bf16.mxu0 0
        %968 = vmatpush1.bf16.msra.mxu0 0
        %969 = vmatprep.subr.bf16.mxu0 0
        %970 = vmatpush1.bf16.msra.mxu0 0
        %971 = vmatprep.subr.bf16.mxu0 0
        %972 = vmatpush1.bf16.msra.mxu0 0
        %973 = vmatprep.subr.bf16.mxu0 0
        %974 = vmatpush1.bf16.msra.mxu0 0
        %975 = vmatprep.subr.bf16.mxu0 0
        %976 = vmatpush1.bf16.msra.mxu0 0
        %977 = vmatprep.subr.bf16.mxu0 0
        %978 = vmatpush1.bf16.msra.mxu0 0
        %979 = vmatprep.subr.bf16.mxu0 0
        %980 = vmatpush1.bf16.msra.mxu0 0
        %981 = vmatprep.subr.bf16.mxu0 0
        %982 = vmatpush1.bf16.msra.mxu0 0
        %983 = vmatprep.subr.bf16.mxu0 0
        %984 = vmatpush1.bf16.msra.mxu0 0
        %985 = vmatprep.subr.bf16.mxu0 0
        %986 = vmatpush1.bf16.msra.mxu0 0
        %987 = vmatprep.subr.bf16.mxu0 0
        %988 = vmatpush1.bf16.msra.mxu0 0
        %989 = vmatprep.subr.bf16.mxu0 0
        %990 = vmatpush1.bf16.msra.mxu0 0
        %991 = vmatprep.subr.bf16.mxu0 0
        %992 = vmatpush1.bf16.msra.mxu0 0
        %993 = vmatprep.subr.bf16.mxu0 0
        %994 = vmatpush1.bf16.msra.mxu0 0
        %995 = vmatprep.mubr.bf16.mxu0 0
        %996 = vmatmul.mubr.bf16.gmra.mrb[0].mxu0 %v841
        %v997 = vpop.f32.mrb[0].mxu0
        %v998 = vadd.f32 %v835, %v997
        %v999 = vpop.f32.mrb[0].mxu0
        %v1000 = vpop.f32.mrb[0].mxu0
        %v1001 = vpop.f32.mrb[0].mxu0
        %1002 = vdwg.mxu0
        %v1003 = vpack.c.bf16 %v440, %v440
        %v1004 = vpack.c.bf16 %v480, %v480
        %v1005 = vpack.c.bf16 %v520, %v520
        %v1006 = vpack.c.bf16 %v560, %v560
        %v1007 = vpack.c.bf16 %v659, %v659
        %v1008 = vpack.c.bf16 %v699, %v699
        %v1009 = vpack.c.bf16 %v739, %v739
        %v1010 = vpack.c.bf16 %v779, %v779
        %vm1011 = vcmask 64512
        %v1013 = vsel %vm1011, %v1003, 0
        %v1016 = vsel %vm1011, %v1007, 0
        %1018 = vmatprep.subr.bf16.mxu0 0
        %1019 = vmatpush1.bf16.xpose.msra.mxu0 %v1016
        %1020 = vmatprep.subr.bf16.mxu0 0
        %1021 = vmatpush1.bf16.xpose.msra.mxu0 0
        %1022 = vmatprep.subr.bf16.mxu0 0
        %1023 = vmatpush1.bf16.xpose.msra.mxu0 0
        %1024 = vmatprep.subr.bf16.mxu0 0
        %1025 = vmatpush1.bf16.xpose.msra.mxu0 0
        %1026 = vmatprep.subr.bf16.mxu0 0
        %1027 = vmatpush1.bf16.xpose.msra.mxu0 0
        %1028 = vmatprep.subr.bf16.mxu0 0
        %1029 = vmatpush1.bf16.xpose.msra.mxu0 0
        %1030 = vmatprep.subr.bf16.mxu0 0
        %1031 = vmatpush1.bf16.xpose.msra.mxu0 0
        %1032 = vmatprep.subr.bf16.mxu0 0
        %1033 = vmatpush1.bf16.xpose.msra.mxu0 0
        %1034 = vmatprep.subr.bf16.mxu0 0
        %1035 = vmatpush1.bf16.xpose.msra.mxu0 0
        %1036 = vmatprep.subr.bf16.mxu0 0
        %1037 = vmatpush1.bf16.xpose.msra.mxu0 0
        %1038 = vmatprep.subr.bf16.mxu0 0
        %1039 = vmatpush1.bf16.xpose.msra.mxu0 0
        %1040 = vmatprep.subr.bf16.mxu0 0
        %1041 = vmatpush1.bf16.xpose.msra.mxu0 0
        %1042 = vmatprep.subr.bf16.mxu0 0
        %1043 = vmatpush1.bf16.xpose.msra.mxu0 0
        %1044 = vmatprep.subr.bf16.mxu0 0
        %1045 = vmatpush1.bf16.xpose.msra.mxu0 0
        %1046 = vmatprep.subr.bf16.mxu0 0
        %1047 = vmatpush1.bf16.xpose.msra.mxu0 0
        %1048 = vmatprep.subr.bf16.mxu0 0
        %1049 = vmatpush1.bf16.xpose.msra.mxu0 0
        %1050 = vmatprep.mubr.bf16.mxu0 0
        %1051 = vmatmul.mubr.bf16.gmra.mrb[0].mxu0 %v1013
        %v1052 = vpop.f32.mrb[0].mxu0
        %v1053 = vadd.f32 0.0, %v1052
        %v1054 = vpop.f32.mrb[0].mxu0
        %v1055 = vpop.f32.mrb[0].mxu0
        %v1056 = vpop.f32.mrb[0].mxu0
        %1057 = vdwg.mxu0
        %v1059 = vsel %vm1011, %v1004, 0
        %v1062 = vsel %vm1011, %v1008, 0
        %1064 = vmatprep.subr.bf16.mxu0 0
        %1065 = vmatpush1.bf16.xpose.msra.mxu0 %v1062
        %1066 = vmatprep.subr.bf16.mxu0 0
        %1067 = vmatpush1.bf16.xpose.msra.mxu0 0
        %1068 = vmatprep.subr.bf16.mxu0 0
        %1069 = vmatpush1.bf16.xpose.msra.mxu0 0
        %1070 = vmatprep.subr.bf16.mxu0 0
        %1071 = vmatpush1.bf16.xpose.msra.mxu0 0
        %1072 = vmatprep.subr.bf16.mxu0 0
        %1073 = vmatpush1.bf16.xpose.msra.mxu0 0
        %1074 = vmatprep.subr.bf16.mxu0 0
        %1075 = vmatpush1.bf16.xpose.msra.mxu0 0
        %1076 = vmatprep.subr.bf16.mxu0 0
        %1077 = vmatpush1.bf16.xpose.msra.mxu0 0
        %1078 = vmatprep.subr.bf16.mxu0 0
        %1079 = vmatpush1.bf16.xpose.msra.mxu0 0
        %1080 = vmatprep.subr.bf16.mxu0 0
        %1081 = vmatpush1.bf16.xpose.msra.mxu0 0
        %1082 = vmatprep.subr.bf16.mxu0 0
        %1083 = vmatpush1.bf16.xpose.msra.mxu0 0
        %1084 = vmatprep.subr.bf16.mxu0 0
        %1085 = vmatpush1.bf16.xpose.msra.mxu0 0
        %1086 = vmatprep.subr.bf16.mxu0 0
        %1087 = vmatpush1.bf16.xpose.msra.mxu0 0
        %1088 = vmatprep.subr.bf16.mxu0 0
        %1089 = vmatpush1.bf16.xpose.msra.mxu0 0
        %1090 = vmatprep.subr.bf16.mxu0 0
        %1091 = vmatpush1.bf16.xpose.msra.mxu0 0
        %1092 = vmatprep.subr.bf16.mxu0 0
        %1093 = vmatpush1.bf16.xpose.msra.mxu0 0
        %1094 = vmatprep.subr.bf16.mxu0 0
        %1095 = vmatpush1.bf16.xpose.msra.mxu0 0
        %1096 = vmatprep.mubr.bf16.mxu0 0
        %1097 = vmatmul.mubr.bf16.gmra.mrb[0].mxu0 %v1059
        %v1098 = vpop.f32.mrb[0].mxu0
        %v1099 = vadd.f32 0.0, %v1098
        %v1100 = vpop.f32.mrb[0].mxu0
        %v1101 = vpop.f32.mrb[0].mxu0
        %v1102 = vpop.f32.mrb[0].mxu0
        %1103 = vdwg.mxu0
        %v1105 = vsel %vm1011, %v1005, 0
        %v1108 = vsel %vm1011, %v1009, 0
        %1110 = vmatprep.subr.bf16.mxu0 0
        %1111 = vmatpush1.bf16.xpose.msra.mxu0 %v1108
        %1112 = vmatprep.subr.bf16.mxu0 0
        %1113 = vmatpush1.bf16.xpose.msra.mxu0 0
        %1114 = vmatprep.subr.bf16.mxu0 0
        %1115 = vmatpush1.bf16.xpose.msra.mxu0 0
        %1116 = vmatprep.subr.bf16.mxu0 0
        %1117 = vmatpush1.bf16.xpose.msra.mxu0 0
        %1118 = vmatprep.subr.bf16.mxu0 0
        %1119 = vmatpush1.bf16.xpose.msra.mxu0 0
        %1120 = vmatprep.subr.bf16.mxu0 0
        %1121 = vmatpush1.bf16.xpose.msra.mxu0 0
        %1122 = vmatprep.subr.bf16.mxu0 0
        %1123 = vmatpush1.bf16.xpose.msra.mxu0 0
        %1124 = vmatprep.subr.bf16.mxu0 0
        %1125 = vmatpush1.bf16.xpose.msra.mxu0 0
        %1126 = vmatprep.subr.bf16.mxu0 0
        %1127 = vmatpush1.bf16.xpose.msra.mxu0 0
        %1128 = vmatprep.subr.bf16.mxu0 0
        %1129 = vmatpush1.bf16.xpose.msra.mxu0 0
        %1130 = vmatprep.subr.bf16.mxu0 0
        %1131 = vmatpush1.bf16.xpose.msra.mxu0 0
        %1132 = vmatprep.subr.bf16.mxu0 0
        %1133 = vmatpush1.bf16.xpose.msra.mxu0 0
        %1134 = vmatprep.subr.bf16.mxu0 0
        %1135 = vmatpush1.bf16.xpose.msra.mxu0 0
        %1136 = vmatprep.subr.bf16.mxu0 0
        %1137 = vmatpush1.bf16.xpose.msra.mxu0 0
        %1138 = vmatprep.subr.bf16.mxu0 0
        %1139 = vmatpush1.bf16.xpose.msra.mxu0 0
        %1140 = vmatprep.subr.bf16.mxu0 0
        %1141 = vmatpush1.bf16.xpose.msra.mxu0 0
        %1142 = vmatprep.mubr.bf16.mxu0 0
        %1143 = vmatmul.mubr.bf16.gmra.mrb[0].mxu0 %v1105
        %v1144 = vpop.f32.mrb[0].mxu0
        %v1145 = vadd.f32 0.0, %v1144
        %v1146 = vpop.f32.mrb[0].mxu0
        %v1147 = vpop.f32.mrb[0].mxu0
        %v1148 = vpop.f32.mrb[0].mxu0
        %1149 = vdwg.mxu0
        %v1151 = vsel %vm1011, %v1006, 0
        %v1154 = vsel %vm1011, %v1010, 0
        %1156 = vmatprep.subr.bf16.mxu0 0
        %1157 = vmatpush1.bf16.xpose.msra.mxu0 %v1154
        %1158 = vmatprep.subr.bf16.mxu0 0
        %1159 = vmatpush1.bf16.xpose.msra.mxu0 0
        %1160 = vmatprep.subr.bf16.mxu0 0
        %1161 = vmatpush1.bf16.xpose.msra.mxu0 0
        %1162 = vmatprep.subr.bf16.mxu0 0
        %1163 = vmatpush1.bf16.xpose.msra.mxu0 0
        %1164 = vmatprep.subr.bf16.mxu0 0
        %1165 = vmatpush1.bf16.xpose.msra.mxu0 0
        %1166 = vmatprep.subr.bf16.mxu0 0
        %1167 = vmatpush1.bf16.xpose.msra.mxu0 0
        %1168 = vmatprep.subr.bf16.mxu0 0
        %1169 = vmatpush1.bf16.xpose.msra.mxu0 0
        %1170 = vmatprep.subr.bf16.mxu0 0
        %1171 = vmatpush1.bf16.xpose.msra.mxu0 0
        %1172 = vmatprep.subr.bf16.mxu0 0
        %1173 = vmatpush1.bf16.xpose.msra.mxu0 0
        %1174 = vmatprep.subr.bf16.mxu0 0
        %1175 = vmatpush1.bf16.xpose.msra.mxu0 0
        %1176 = vmatprep.subr.bf16.mxu0 0
        %1177 = vmatpush1.bf16.xpose.msra.mxu0 0
        %1178 = vmatprep.subr.bf16.mxu0 0
        %1179 = vmatpush1.bf16.xpose.msra.mxu0 0
        %1180 = vmatprep.subr.bf16.mxu0 0
        %1181 = vmatpush1.bf16.xpose.msra.mxu0 0
        %1182 = vmatprep.subr.bf16.mxu0 0
        %1183 = vmatpush1.bf16.xpose.msra.mxu0 0
        %1184 = vmatprep.subr.bf16.mxu0 0
        %1185 = vmatpush1.bf16.xpose.msra.mxu0 0
        %1186 = vmatprep.subr.bf16.mxu0 0
        %1187 = vmatpush1.bf16.xpose.msra.mxu0 0
        %1188 = vmatprep.mubr.bf16.mxu0 0
        %1189 = vmatmul.mubr.bf16.gmra.mrb[0].mxu0 %v1151
        %v1190 = vpop.f32.mrb[0].mxu0
        %v1191 = vadd.f32 0.0, %v1190
        %v1192 = vpop.f32.mrb[0].mxu0
        %v1193 = vpop.f32.mrb[0].mxu0
        %v1194 = vpop.f32.mrb[0].mxu0
        %1195 = vdwg.mxu0
        %v1196 = vmul.f32 %v1053, 0.35355338
        %v1197 = vmul.f32 %v1099, 0.35355338
        %v1198 = vmul.f32 %v1145, 0.35355338
        %v1199 = vmul.f32 %v1191, 0.35355338
        %v1200 = vsel %vm1011, %v1196, -inf
        %1201 = vmax.xlane.f32.xlu0 %v1200
        %v1202 = vpop.xlane.xlu0 %1201
        %v1203 = vsel %vm1011, %v1197, -inf
        %1204 = vmax.xlane.f32.xlu0 %v1203
        %v1205 = vpop.xlane.xlu0 %1204
        %v1206 = vsel %vm1011, %v1198, -inf
        %1207 = vmax.xlane.f32.xlu0 %v1206
        %v1208 = vpop.xlane.xlu0 %1207
        %v1209 = vsel %vm1011, %v1199, -inf
        %1210 = vmax.xlane.f32.xlu0 %v1209
        %v1211 = vpop.xlane.xlu0 %1210
        %v1212 = vsub.f32 %v1196, %v1202
        %v1213 = vsub.f32 %v1197, %v1205
        %v1214 = vsub.f32 %v1198, %v1208
        %v1215 = vsub.f32 %v1199, %v1211
        %v1216 = vmul.f32 %v1212, 1.442695
        %v1217 = vpow.pop %v1216
        %v1218 = vmul.f32 %v1213, 1.442695
        %v1219 = vpow.pop %v1218
        %v1220 = vmul.f32 %v1214, 1.442695
        %v1221 = vpow.pop %v1220
        %v1222 = vmul.f32 %v1215, 1.442695
        %v1223 = vpow.pop %v1222
        %v1224 = vsel %vm1011, %v1217, 0.0
        %1225 = vadd.xlane.f32.xlu0 %v1224
        %v1226 = vpop.xlane.xlu0 %1225
        %v1227 = vsel %vm1011, %v1219, 0.0
        %1228 = vadd.xlane.f32.xlu0 %v1227
        %v1229 = vpop.xlane.xlu0 %1228
        %v1230 = vsel %vm1011, %v1221, 0.0
        %1231 = vadd.xlane.f32.xlu0 %v1230
        %v1232 = vpop.xlane.xlu0 %1231
        %v1233 = vsel %vm1011, %v1223, 0.0
        %1234 = vadd.xlane.f32.xlu0 %v1233
        %v1235 = vpop.xlane.xlu0 %1234
        %v1236 = vrcp.pop %v1226
        %v1237 = vrcp.pop %v1229
        %v1238 = vrcp.pop %v1232
        %v1239 = vrcp.pop %v1235
        %v1240 = vmul.f32 %v1217, %v1236
        %v1241 = vmul.f32 %v1219, %v1237
        %v1242 = vmul.f32 %v1221, %v1238
        %v1243 = vmul.f32 %v1223, %v1239
        %v1244 = vpack.c.bf16 %v1240, %v1240
        %v1245 = vpack.c.bf16 %v1241, %v1241
        %v1246 = vpack.c.bf16 %v1242, %v1242
        %v1247 = vpack.c.bf16 %v1243, %v1243
        %v1248 = vpack.c.bf16 %v878, %v878
        %v1249 = vpack.c.bf16 %v918, %v918
        %v1250 = vpack.c.bf16 %v958, %v958
        %v1251 = vpack.c.bf16 %v998, %v998
        %v1253 = vsel %vm1011, %v1244, 0
        %vm1255 = vcmask 1043456
        %v1257 = vsel %vm1255, %v1248, 0
        %1259 = vmatprep.subr.bf16.mxu0 0
        %1260 = vmatpush1.bf16.msra.mxu0 %v1257
        %1261 = vmatprep.subr.bf16.mxu0 0
        %1262 = vmatpush1.bf16.msra.mxu0 0
        %1263 = vmatprep.subr.bf16.mxu0 0
        %1264 = vmatpush1.bf16.msra.mxu0 0
        %1265 = vmatprep.subr.bf16.mxu0 0
        %1266 = vmatpush1.bf16.msra.mxu0 0
        %1267 = vmatprep.subr.bf16.mxu0 0
        %1268 = vmatpush1.bf16.msra.mxu0 0
        %1269 = vmatprep.subr.bf16.mxu0 0
        %1270 = vmatpush1.bf16.msra.mxu0 0
        %1271 = vmatprep.subr.bf16.mxu0 0
        %1272 = vmatpush1.bf16.msra.mxu0 0
        %1273 = vmatprep.subr.bf16.mxu0 0
        %1274 = vmatpush1.bf16.msra.mxu0 0
        %1275 = vmatprep.subr.bf16.mxu0 0
        %1276 = vmatpush1.bf16.msra.mxu0 0
        %1277 = vmatprep.subr.bf16.mxu0 0
        %1278 = vmatpush1.bf16.msra.mxu0 0
        %1279 = vmatprep.subr.bf16.mxu0 0
        %1280 = vmatpush1.bf16.msra.mxu0 0
        %1281 = vmatprep.subr.bf16.mxu0 0
        %1282 = vmatpush1.bf16.msra.mxu0 0
        %1283 = vmatprep.subr.bf16.mxu0 0
        %1284 = vmatpush1.bf16.msra.mxu0 0
        %1285 = vmatprep.subr.bf16.mxu0 0
        %1286 = vmatpush1.bf16.msra.mxu0 0
        %1287 = vmatprep.subr.bf16.mxu0 0
        %1288 = vmatpush1.bf16.msra.mxu0 0
        %1289 = vmatprep.subr.bf16.mxu0 0
        %1290 = vmatpush1.bf16.msra.mxu0 0
        %1291 = vmatprep.mubr.bf16.mxu0 0
        %1292 = vmatmul.mubr.bf16.gmra.mrb[0].mxu0 %v1253
        %v1293 = vpop.f32.mrb[0].mxu0
        %v1294 = vadd.f32 0.0, %v1293
        %v1295 = vpop.f32.mrb[0].mxu0
        %v1296 = vpop.f32.mrb[0].mxu0
        %v1297 = vpop.f32.mrb[0].mxu0
        %1298 = vdwg.mxu0
        %v1300 = vsel %vm1011, %v1245, 0
        %v1303 = vsel %vm1255, %v1249, 0
        %1305 = vmatprep.subr.bf16.mxu0 0
        %1306 = vmatpush1.bf16.msra.mxu0 %v1303
        %1307 = vmatprep.subr.bf16.mxu0 0
        %1308 = vmatpush1.bf16.msra.mxu0 0
        %1309 = vmatprep.subr.bf16.mxu0 0
        %1310 = vmatpush1.bf16.msra.mxu0 0
        %1311 = vmatprep.subr.bf16.mxu0 0
        %1312 = vmatpush1.bf16.msra.mxu0 0
        %1313 = vmatprep.subr.bf16.mxu0 0
        %1314 = vmatpush1.bf16.msra.mxu0 0
        %1315 = vmatprep.subr.bf16.mxu0 0
        %1316 = vmatpush1.bf16.msra.mxu0 0
        %1317 = vmatprep.subr.bf16.mxu0 0
        %1318 = vmatpush1.bf16.msra.mxu0 0
        %1319 = vmatprep.subr.bf16.mxu0 0
        %1320 = vmatpush1.bf16.msra.mxu0 0
        %1321 = vmatprep.subr.bf16.mxu0 0
        %1322 = vmatpush1.bf16.msra.mxu0 0
        %1323 = vmatprep.subr.bf16.mxu0 0
        %1324 = vmatpush1.bf16.msra.mxu0 0
        %1325 = vmatprep.subr.bf16.mxu0 0
        %1326 = vmatpush1.bf16.msra.mxu0 0
        %1327 = vmatprep.subr.bf16.mxu0 0
        %1328 = vmatpush1.bf16.msra.mxu0 0
        %1329 = vmatprep.subr.bf16.mxu0 0
        %1330 = vmatpush1.bf16.msra.mxu0 0
        %1331 = vmatprep.subr.bf16.mxu0 0
        %1332 = vmatpush1.bf16.msra.mxu0 0
        %1333 = vmatprep.subr.bf16.mxu0 0
        %1334 = vmatpush1.bf16.msra.mxu0 0
        %1335 = vmatprep.subr.bf16.mxu0 0
        %1336 = vmatpush1.bf16.msra.mxu0 0
        %1337 = vmatprep.mubr.bf16.mxu0 0
        %1338 = vmatmul.mubr.bf16.gmra.mrb[0].mxu0 %v1300
        %v1339 = vpop.f32.mrb[0].mxu0
        %v1340 = vadd.f32 0.0, %v1339
        %v1341 = vpop.f32.mrb[0].mxu0
        %v1342 = vpop.f32.mrb[0].mxu0
        %v1343 = vpop.f32.mrb[0].mxu0
        %1344 = vdwg.mxu0
        %v1346 = vsel %vm1011, %v1246, 0
        %v1349 = vsel %vm1255, %v1250, 0
        %1351 = vmatprep.subr.bf16.mxu0 0
        %1352 = vmatpush1.bf16.msra.mxu0 %v1349
        %1353 = vmatprep.subr.bf16.mxu0 0
        %1354 = vmatpush1.bf16.msra.mxu0 0
        %1355 = vmatprep.subr.bf16.mxu0 0
        %1356 = vmatpush1.bf16.msra.mxu0 0
        %1357 = vmatprep.subr.bf16.mxu0 0
        %1358 = vmatpush1.bf16.msra.mxu0 0
        %1359 = vmatprep.subr.bf16.mxu0 0
        %1360 = vmatpush1.bf16.msra.mxu0 0
        %1361 = vmatprep.subr.bf16.mxu0 0
        %1362 = vmatpush1.bf16.msra.mxu0 0
        %1363 = vmatprep.subr.bf16.mxu0 0
        %1364 = vmatpush1.bf16.msra.mxu0 0
        %1365 = vmatprep.subr.bf16.mxu0 0
        %1366 = vmatpush1.bf16.msra.mxu0 0
        %1367 = vmatprep.subr.bf16.mxu0 0
        %1368 = vmatpush1.bf16.msra.mxu0 0
        %1369 = vmatprep.subr.bf16.mxu0 0
        %1370 = vmatpush1.bf16.msra.mxu0 0
        %1371 = vmatprep.subr.bf16.mxu0 0
        %1372 = vmatpush1.bf16.msra.mxu0 0
        %1373 = vmatprep.subr.bf16.mxu0 0
        %1374 = vmatpush1.bf16.msra.mxu0 0
        %1375 = vmatprep.subr.bf16.mxu0 0
        %1376 = vmatpush1.bf16.msra.mxu0 0
        %1377 = vmatprep.subr.bf16.mxu0 0
        %1378 = vmatpush1.bf16.msra.mxu0 0
        %1379 = vmatprep.subr.bf16.mxu0 0
        %1380 = vmatpush1.bf16.msra.mxu0 0
        %1381 = vmatprep.subr.bf16.mxu0 0
        %1382 = vmatpush1.bf16.msra.mxu0 0
        %1383 = vmatprep.mubr.bf16.mxu0 0
        %1384 = vmatmul.mubr.bf16.gmra.mrb[0].mxu0 %v1346
        %v1385 = vpop.f32.mrb[0].mxu0
        %v1386 = vadd.f32 0.0, %v1385
        %v1387 = vpop.f32.mrb[0].mxu0
        %v1388 = vpop.f32.mrb[0].mxu0
        %v1389 = vpop.f32.mrb[0].mxu0
        %1390 = vdwg.mxu0
        %v1392 = vsel %vm1011, %v1247, 0
        %v1395 = vsel %vm1255, %v1251, 0
        %1397 = vmatprep.subr.bf16.mxu0 0
        %1398 = vmatpush1.bf16.msra.mxu0 %v1395
        %1399 = vmatprep.subr.bf16.mxu0 0
        %1400 = vmatpush1.bf16.msra.mxu0 0
        %1401 = vmatprep.subr.bf16.mxu0 0
        %1402 = vmatpush1.bf16.msra.mxu0 0
        %1403 = vmatprep.subr.bf16.mxu0 0
        %1404 = vmatpush1.bf16.msra.mxu0 0
        %1405 = vmatprep.subr.bf16.mxu0 0
        %1406 = vmatpush1.bf16.msra.mxu0 0
        %1407 = vmatprep.subr.bf16.mxu0 0
        %1408 = vmatpush1.bf16.msra.mxu0 0
        %1409 = vmatprep.subr.bf16.mxu0 0
        %1410 = vmatpush1.bf16.msra.mxu0 0
        %1411 = vmatprep.subr.bf16.mxu0 0
        %1412 = vmatpush1.bf16.msra.mxu0 0
        %1413 = vmatprep.subr.bf16.mxu0 0
        %1414 = vmatpush1.bf16.msra.mxu0 0
        %1415 = vmatprep.subr.bf16.mxu0 0
        %1416 = vmatpush1.bf16.msra.mxu0 0
        %1417 = vmatprep.subr.bf16.mxu0 0
        %1418 = vmatpush1.bf16.msra.mxu0 0
        %1419 = vmatprep.subr.bf16.mxu0 0
        %1420 = vmatpush1.bf16.msra.mxu0 0
        %1421 = vmatprep.subr.bf16.mxu0 0
        %1422 = vmatpush1.bf16.msra.mxu0 0
        %1423 = vmatprep.subr.bf16.mxu0 0
        %1424 = vmatpush1.bf16.msra.mxu0 0
        %1425 = vmatprep.subr.bf16.mxu0 0
        %1426 = vmatpush1.bf16.msra.mxu0 0
        %1427 = vmatprep.subr.bf16.mxu0 0
        %1428 = vmatpush1.bf16.msra.mxu0 0
        %1429 = vmatprep.mubr.bf16.mxu0 0
        %1430 = vmatmul.mubr.bf16.gmra.mrb[0].mxu0 %v1392
        %v1431 = vpop.f32.mrb[0].mxu0
        %v1432 = vadd.f32 0.0, %v1431
        %v1433 = vpop.f32.mrb[0].mxu0
        %v1434 = vpop.f32.mrb[0].mxu0
        %v1435 = vpop.f32.mrb[0].mxu0
        %1436 = vdwg.mxu0
        %v1437 = vpack.c.bf16 %v1294, %v1294
        %v1438 = vpack.c.bf16 %v1340, %v1340
        %v1439 = vpack.c.bf16 %v1386, %v1386
        %v1440 = vpack.c.bf16 %v1432, %v1432
        %v1441 = vld [vmem:[%s5] sm:$0xff]
        %v1442 = vld [vmem:[%s5 + $0x8] sm:$0xff]
        %v1443 = vld [vmem:[%s5 + $0x10] sm:$0xff]
        %v1444 = vld [vmem:[%s5 + $0x18] sm:$0xff]
        %v1445 = vpack.c.bf16 %v1441, %v1441
        %v1446 = vpack.c.bf16 %v1442, %v1442
        %v1447 = vpack.c.bf16 %v1443, %v1443
        %v1448 = vpack.c.bf16 %v1444, %v1444
        %v1450 = vsel %vm1011, %v1437, 0
        %v1453 = vsel %vm1255, %v1445, 0
        %1455 = vmatprep.subr.bf16.mxu0 0
        %1456 = vmatpush1.bf16.msra.mxu0 %v1453
        %1457 = vmatprep.subr.bf16.mxu0 0
        %1458 = vmatpush1.bf16.msra.mxu0 0
        %1459 = vmatprep.subr.bf16.mxu0 0
        %1460 = vmatpush1.bf16.msra.mxu0 0
        %1461 = vmatprep.subr.bf16.mxu0 0
        %1462 = vmatpush1.bf16.msra.mxu0 0
        %1463 = vmatprep.subr.bf16.mxu0 0
        %1464 = vmatpush1.bf16.msra.mxu0 0
        %1465 = vmatprep.subr.bf16.mxu0 0
        %1466 = vmatpush1.bf16.msra.mxu0 0
        %1467 = vmatprep.subr.bf16.mxu0 0
        %1468 = vmatpush1.bf16.msra.mxu0 0
        %1469 = vmatprep.subr.bf16.mxu0 0
        %1470 = vmatpush1.bf16.msra.mxu0 0
        %1471 = vmatprep.subr.bf16.mxu0 0
        %1472 = vmatpush1.bf16.msra.mxu0 0
        %1473 = vmatprep.subr.bf16.mxu0 0
        %1474 = vmatpush1.bf16.msra.mxu0 0
        %1475 = vmatprep.subr.bf16.mxu0 0
        %1476 = vmatpush1.bf16.msra.mxu0 0
        %1477 = vmatprep.subr.bf16.mxu0 0
        %1478 = vmatpush1.bf16.msra.mxu0 0
        %1479 = vmatprep.subr.bf16.mxu0 0
        %1480 = vmatpush1.bf16.msra.mxu0 0
        %1481 = vmatprep.subr.bf16.mxu0 0
        %1482 = vmatpush1.bf16.msra.mxu0 0
        %1483 = vmatprep.subr.bf16.mxu0 0
        %1484 = vmatpush1.bf16.msra.mxu0 0
        %1485 = vmatprep.subr.bf16.mxu0 0
        %1486 = vmatpush1.bf16.msra.mxu0 0
        %1487 = vmatprep.mubr.bf16.mxu0 0
        %1488 = vmatmul.mubr.bf16.gmra.mrb[0].mxu0 %v1450
        %v1489 = vpop.f32.mrb[0].mxu0
        %v1490 = vadd.f32 0.0, %v1489
        %v1491 = vpop.f32.mrb[0].mxu0
        %v1492 = vpop.f32.mrb[0].mxu0
        %v1493 = vpop.f32.mrb[0].mxu0
        %1494 = vdwg.mxu0
        %v1496 = vsel %vm1011, %v1438, 0
        %v1499 = vsel %vm1255, %v1446, 0
        %1501 = vmatprep.subr.bf16.mxu0 0
        %1502 = vmatpush1.bf16.msra.mxu0 %v1499
        %1503 = vmatprep.subr.bf16.mxu0 0
        %1504 = vmatpush1.bf16.msra.mxu0 0
        %1505 = vmatprep.subr.bf16.mxu0 0
        %1506 = vmatpush1.bf16.msra.mxu0 0
        %1507 = vmatprep.subr.bf16.mxu0 0
        %1508 = vmatpush1.bf16.msra.mxu0 0
        %1509 = vmatprep.subr.bf16.mxu0 0
        %1510 = vmatpush1.bf16.msra.mxu0 0
        %1511 = vmatprep.subr.bf16.mxu0 0
        %1512 = vmatpush1.bf16.msra.mxu0 0
        %1513 = vmatprep.subr.bf16.mxu0 0
        %1514 = vmatpush1.bf16.msra.mxu0 0
        %1515 = vmatprep.subr.bf16.mxu0 0
        %1516 = vmatpush1.bf16.msra.mxu0 0
        %1517 = vmatprep.subr.bf16.mxu0 0
        %1518 = vmatpush1.bf16.msra.mxu0 0
        %1519 = vmatprep.subr.bf16.mxu0 0
        %1520 = vmatpush1.bf16.msra.mxu0 0
        %1521 = vmatprep.subr.bf16.mxu0 0
        %1522 = vmatpush1.bf16.msra.mxu0 0
        %1523 = vmatprep.subr.bf16.mxu0 0
        %1524 = vmatpush1.bf16.msra.mxu0 0
        %1525 = vmatprep.subr.bf16.mxu0 0
        %1526 = vmatpush1.bf16.msra.mxu0 0
        %1527 = vmatprep.subr.bf16.mxu0 0
        %1528 = vmatpush1.bf16.msra.mxu0 0
        %1529 = vmatprep.subr.bf16.mxu0 0
        %1530 = vmatpush1.bf16.msra.mxu0 0
        %1531 = vmatprep.subr.bf16.mxu0 0
        %1532 = vmatpush1.bf16.msra.mxu0 0
        %1533 = vmatprep.mubr.bf16.mxu0 0
        %1534 = vmatmul.mubr.bf16.gmra.mrb[0].mxu0 %v1496
        %v1535 = vpop.f32.mrb[0].mxu0
        %v1536 = vadd.f32 0.0, %v1535
        %v1537 = vpop.f32.mrb[0].mxu0
        %v1538 = vpop.f32.mrb[0].mxu0
        %v1539 = vpop.f32.mrb[0].mxu0
        %1540 = vdwg.mxu0
        %v1542 = vsel %vm1011, %v1439, 0
        %v1545 = vsel %vm1255, %v1447, 0
        %1547 = vmatprep.subr.bf16.mxu0 0
        %1548 = vmatpush1.bf16.msra.mxu0 %v1545
        %1549 = vmatprep.subr.bf16.mxu0 0
        %1550 = vmatpush1.bf16.msra.mxu0 0
        %1551 = vmatprep.subr.bf16.mxu0 0
        %1552 = vmatpush1.bf16.msra.mxu0 0
        %1553 = vmatprep.subr.bf16.mxu0 0
        %1554 = vmatpush1.bf16.msra.mxu0 0
        %1555 = vmatprep.subr.bf16.mxu0 0
        %1556 = vmatpush1.bf16.msra.mxu0 0
        %1557 = vmatprep.subr.bf16.mxu0 0
        %1558 = vmatpush1.bf16.msra.mxu0 0
        %1559 = vmatprep.subr.bf16.mxu0 0
        %1560 = vmatpush1.bf16.msra.mxu0 0
        %1561 = vmatprep.subr.bf16.mxu0 0
        %1562 = vmatpush1.bf16.msra.mxu0 0
        %1563 = vmatprep.subr.bf16.mxu0 0
        %1564 = vmatpush1.bf16.msra.mxu0 0
        %1565 = vmatprep.subr.bf16.mxu0 0
        %1566 = vmatpush1.bf16.msra.mxu0 0
        %1567 = vmatprep.subr.bf16.mxu0 0
        %1568 = vmatpush1.bf16.msra.mxu0 0
        %1569 = vmatprep.subr.bf16.mxu0 0
        %1570 = vmatpush1.bf16.msra.mxu0 0
        %1571 = vmatprep.subr.bf16.mxu0 0
        %1572 = vmatpush1.bf16.msra.mxu0 0
        %1573 = vmatprep.subr.bf16.mxu0 0
        %1574 = vmatpush1.bf16.msra.mxu0 0
        %1575 = vmatprep.subr.bf16.mxu0 0
        %1576 = vmatpush1.bf16.msra.mxu0 0
        %1577 = vmatprep.subr.bf16.mxu0 0
        %1578 = vmatpush1.bf16.msra.mxu0 0
        %1579 = vmatprep.mubr.bf16.mxu0 0
        %1580 = vmatmul.mubr.bf16.gmra.mrb[0].mxu0 %v1542
        %v1581 = vpop.f32.mrb[0].mxu0
        %v1582 = vadd.f32 0.0, %v1581
        %v1583 = vpop.f32.mrb[0].mxu0
        %v1584 = vpop.f32.mrb[0].mxu0
        %v1585 = vpop.f32.mrb[0].mxu0
        %1586 = vdwg.mxu0
        %v1588 = vsel %vm1011, %v1440, 0
        %v1591 = vsel %vm1255, %v1448, 0
        %1593 = vmatprep.subr.bf16.mxu0 0
        %1594 = vmatpush1.bf16.msra.mxu0 %v1591
        %1595 = vmatprep.subr.bf16.mxu0 0
        %1596 = vmatpush1.bf16.msra.mxu0 0
        %1597 = vmatprep.subr.bf16.mxu0 0
        %1598 = vmatpush1.bf16.msra.mxu0 0
        %1599 = vmatprep.subr.bf16.mxu0 0
        %1600 = vmatpush1.bf16.msra.mxu0 0
        %1601 = vmatprep.subr.bf16.mxu0 0
        %1602 = vmatpush1.bf16.msra.mxu0 0
        %1603 = vmatprep.subr.bf16.mxu0 0
        %1604 = vmatpush1.bf16.msra.mxu0 0
        %1605 = vmatprep.subr.bf16.mxu0 0
        %1606 = vmatpush1.bf16.msra.mxu0 0
        %1607 = vmatprep.subr.bf16.mxu0 0
        %1608 = vmatpush1.bf16.msra.mxu0 0
        %1609 = vmatprep.subr.bf16.mxu0 0
        %1610 = vmatpush1.bf16.msra.mxu0 0
        %1611 = vmatprep.subr.bf16.mxu0 0
        %1612 = vmatpush1.bf16.msra.mxu0 0
        %1613 = vmatprep.subr.bf16.mxu0 0
        %1614 = vmatpush1.bf16.msra.mxu0 0
        %1615 = vmatprep.subr.bf16.mxu0 0
        %1616 = vmatpush1.bf16.msra.mxu0 0
        %1617 = vmatprep.subr.bf16.mxu0 0
        %1618 = vmatpush1.bf16.msra.mxu0 0
        %1619 = vmatprep.subr.bf16.mxu0 0
        %1620 = vmatpush1.bf16.msra.mxu0 0
        %1621 = vmatprep.subr.bf16.mxu0 0
        %1622 = vmatpush1.bf16.msra.mxu0 0
        %1623 = vmatprep.subr.bf16.mxu0 0
        %1624 = vmatpush1.bf16.msra.mxu0 0
        %1625 = vmatprep.mubr.bf16.mxu0 0
        %1626 = vmatmul.mubr.bf16.gmra.mrb[0].mxu0 %v1588
        %v1627 = vpop.f32.mrb[0].mxu0
        %v1628 = vadd.f32 0.0, %v1627
        %v1629 = vpop.f32.mrb[0].mxu0
        %v1630 = vpop.f32.mrb[0].mxu0
        %v1631 = vpop.f32.mrb[0].mxu0
        %1632 = vdwg.mxu0
        %v1633 = vsel %vm401, %v1490, 0.0
        %v1634 = vsel %vm401, %v1536, 0.0
        %v1635 = vadd.f32 %v1633, %v1634
        %v1636 = vsel %vm401, %v1582, 0.0
        %v1637 = vadd.f32 %v1635, %v1636
        %v1638 = vsel %vm401, %v1628, 0.0
        %v1639 = vadd.f32 %v1637, %v1638
        %v1640 = vld [vmem:[%s6] sm:$0x1]
        %v1642 = vlaneseq
        %v1643 = vshrl.u32 %v1642, 7
        %v1644 = vsub.s32 0, %v1643
        %v1645 = vrot.slane %v1640, %v1644
        %v1647 = vadd.f32 %v1639, %v1645
        %1648 = vst.msk [vmem:[%s326] sm:$0xff] %vm401, %v1647
        %1649 = vst.msk [vmem:[%s333] sm:$0xff] %vm1011, %v1240
        %1650 = vst.msk [vmem:[%s333 + $0x8] sm:$0xff] %vm1011, %v1241
        %1651 = vst.msk [vmem:[%s333 + $0x10] sm:$0xff] %vm1011, %v1242
        %1652 = vst.msk [vmem:[%s333 + $0x18] sm:$0xff] %vm1011, %v1243
        %s1653 = sand.u32 %s196, 1
        %s1654 = scalar_lea.sflag [#allocation3], %s1653
        %s1655 = sand.u32 %s196, 1
        %s1656 = smul.addr %s1655, 8
        %s1657 = scalar_lea.vmem [#allocation2], %s1656
        %s1658 = sand.u32 %s222, 1
        %s1659 = scalar_lea.sflag [#allocation5], %s1658
        %s1660 = sand.u32 %s222, 1
        %s1661 = smul.addr %s1660, 32
        %s1662 = scalar_lea.vmem [#allocation4], %s1661
        // Predicated region
        $region49: #{tpu_custom_call.1} parent=47 // pred_check
          %p1663 = pneg %p206
        $region50: #{tpu_custom_call.1} parent=47 // pred_check_branch
          %1665 = sbr.rel (%p1663) target = $region52
        $region51: #{tpu_custom_call.1} parent=47 // pred_region
          %s1667 = ssub.s32 128, 128
          %1668 = vsyncadd %s1654, %s1667
          %s1669 = smul.addr %s26, 128
          %s1670 = scalar_lea.hbm %s7, %s1669
          %s1672 = sshll.u32 %s1657, 4
          %s1673 = int_to_ptr.vmem [resolvable:$true] %s1672
          %1675 = dma.vmem_to_hbm [thread:$0]  %s1673, 128, %s1670, %s1654
        $region52: #{tpu_custom_call.1} parent=47 // pred_fallthru
          _
        // Predicated region
        $region53: #{tpu_custom_call.1} parent=47 // pred_check
          %p1676 = pneg %p232
        $region54: #{tpu_custom_call.1} parent=47 // pred_check_branch
          %1678 = sbr.rel (%p1676) target = $region56
        $region55: #{tpu_custom_call.1} parent=47 // pred_region
          %s1680 = ssub.s32 512, 512
          %1681 = vsyncadd %s1659, %s1680
          %s1682 = smul.addr %s26, 4
          %s1683 = smul.addr %s1682, 128
          %s1684 = scalar_lea.hbm %s8, %s1683
          %s1685 = sshll.u32 %s1662, 4
          %s1686 = int_to_ptr.vmem [resolvable:$true] %s1685
          %1691 = dma.vmem_to_hbm [thread:$0]  %s1686, 512, %s1684, %s1659, 128, 128, 8
        $region56: #{tpu_custom_call.1} parent=47 // pred_fallthru
          _
      $region48: #{tpu_custom_call.1} parent=5 // pred_fallthru
        _
      %p1692 = scmp.le.s32.totalorder 2, %s21
      // Predicated region
      $region57: #{tpu_custom_call.1} parent=5 // pred_check
        %p1693 = pneg %p1692
      $region58: #{tpu_custom_call.1} parent=5 // pred_check_branch
        %1695 = sbr.rel (%p1693) target = $region60
      $region59: #{tpu_custom_call.1} parent=5 // pred_region
        %s1696 = ssub.s32 %s21, 2
        // Predicated region
        $region61: #{tpu_custom_call.1} parent=59 // pred_check
          %p1697 = pneg %p212
        $region62: #{tpu_custom_call.1} parent=59 // pred_check_branch
          %1699 = sbr.rel (%p1697) target = $region64
        $region63: #{tpu_custom_call.1} parent=59 // pred_region
          %s1700 = sand.u32 %s197, 1
          %s1701 = scalar_lea.sflag [#allocation3], %s1700
          %s1702 = sand.u32 %s197, 1
          %s1703 = smul.addr %s1702, 8
          %s1704 = scalar_lea.vmem [#allocation2], %s1703
          %1705 = dma.done %s1701, 128
        $region64: #{tpu_custom_call.1} parent=59 // pred_fallthru
          _
        // Predicated region
        $region65: #{tpu_custom_call.1} parent=59 // pred_check
          %p1706 = pneg %p238
        $region66: #{tpu_custom_call.1} parent=59 // pred_check_branch
          %1708 = sbr.rel (%p1706) target = $region68
        $region67: #{tpu_custom_call.1} parent=59 // pred_region
          %s1709 = sand.u32 %s223, 1
          %s1710 = scalar_lea.sflag [#allocation5], %s1709
          %s1711 = sand.u32 %s223, 1
          %s1712 = smul.addr %s1711, 32
          %s1713 = scalar_lea.vmem [#allocation4], %s1712
          %1714 = dma.done %s1710, 512
        $region68: #{tpu_custom_call.1} parent=59 // pred_fallthru
          _
      $region60: #{tpu_custom_call.1} parent=5 // pred_fallthru
        _
    $region6: #{tpu_custom_call.1} parent=1 // loop_footer
      %s25 = sadd.s32 1, %s21
    $region7: #{tpu_custom_call.1} parent=1 // loop_footer_branch
      %20 = sbr.rel target = $region3
    $region8: #{tpu_custom_call.1} parent=1 // loop_exit
      _
    %1715 = vsyncpa [#allocation3], 1
    %s1716 = scalar_lea.sflag [#allocation3], 1
    %1717 = vsyncpa %s1716, 1
    %1718 = vsyncpa [#allocation5], 1
    %s1719 = scalar_lea.sflag [#allocation5], 1
    %1720 = vsyncpa %s1719, 1

</llo_original>
